<compile_context>
chip_gen: v5e
topology: v5e:2x2
jax: 0.10.0
libtpu: 0.0.40
codegen_flags: <defaults>
</compile_context>

<pallas_src>
import math

import jax
import jax.numpy as jnp
from jax.experimental import pallas as pl
from jax.experimental.pallas import tpu as pltpu


def _round_up(v, m):
    return ((v + m - 1) // m) * m


def _pick_fout_tile(fout_p):
    """Largest lane-dense F_out tile that still yields >=2 grid steps.

    Keeping at least two 'parallel' tiles lets the grid axis be sharded across
    both TensorCores on v7x; on single-TC chips the extra step costs ~0.35 us.
    """
    for tn in (512, 384, 256, 128):
        if fout_p % tn == 0 and fout_p // tn >= 2:
            return tn
    return fout_p  # tiny F_out: single tile / single program.


def _fused_gcn_kernel(x_ref, adj_ref, w_ref, o_ref, sup_ref):
    """One (N_p, tn) output tile: out = adj @ (x @ W), fully VMEM-resident."""
    # Phase 1: support = x @ W  (bf16 operands, f32 accumulate).  The result
    # stays in the f32 VMEM scratch -- it never leaves VMEM and is never
    # down-cast to bf16.
    sup_ref[...] = jnp.dot(
        x_ref[...], w_ref[...], preferred_element_type=jnp.float32
    )
    # Phase 2: out = adj @ support  (f32 x f32 -> f32), same grid step.
    o_ref[...] = jnp.dot(
        adj_ref[...], sup_ref[...], preferred_element_type=jnp.float32
    ).astype(o_ref.dtype)


def graph_convolution(x, adj, weight, bias=None):
    """GCN layer forward: adj @ (x @ weight) [+ bias].

    x: [N, F_in], adj: [N, N], weight: [F_in, F_out] -> [N, F_out]

    Fused single-kernel design; assumes the (padded) node and F_in dimensions
    fit in VMEM, which is trivially true for the ML-GCN label graph (N=80).
    """
    N, f_in = x.shape
    f_in_w, f_out = weight.shape
    assert adj.shape == (N, N)
    assert f_in_w == f_in
    out_dtype = x.dtype

    # Lane-dense padding: every matmul dim padded to a multiple of 128.  Note
    # the reduction (F_in) axis is padded only to 128-multiples (300 -> 384).
    n_p = _round_up(N, 128)
    fin_p = _round_up(f_in, 128)
    fout_p = _round_up(f_out, 128)
    tn = _pick_fout_tile(fout_p)

    # Pad once with zeros (exact for matmul).  x / W are cast to bf16 for the
    # MXU; adj stays f32 so the second matmul (adj @ support) is f32 x f32.
    # TODO(synk): in a real model the static weight's pad+bf16 cast should be
    # cached once at parameter-load time instead of per forward call.
    x_p = jnp.pad(x, ((0, n_p - N), (0, fin_p - f_in))).astype(jnp.bfloat16)
    adj_p = jnp.pad(adj, ((0, n_p - N), (0, n_p - N))).astype(jnp.float32)
    w_p = jnp.pad(
        weight, ((0, fin_p - f_in), (0, fout_p - f_out))
    ).astype(jnp.bfloat16)

    flops = 2 * n_p * fin_p * fout_p + 2 * n_p * n_p * fout_p
    bytes_accessed = (
        x_p.size * x_p.dtype.itemsize
        + adj_p.size * adj_p.dtype.itemsize
        + w_p.size * w_p.dtype.itemsize
        + n_p * fout_p * 4
    )

    out_p = pl.pallas_call(
        _fused_gcn_kernel,
        out_shape=jax.ShapeDtypeStruct((n_p, fout_p), jnp.float32),
        grid_spec=pltpu.PrefetchScalarGridSpec(
            num_scalar_prefetch=0,
            grid=(fout_p // tn,),
            in_specs=[
                # x and adj blocks are invariant across j -> fetched once.
                pl.BlockSpec((n_p, fin_p), lambda j: (0, 0)),
                pl.BlockSpec((n_p, n_p), lambda j: (0, 0)),
                # Weight column slab for this F_out tile.
                pl.BlockSpec((fin_p, tn), lambda j: (0, j)),
            ],
            out_specs=pl.BlockSpec((n_p, tn), lambda j: (0, j)),
            scratch_shapes=[pltpu.VMEM((n_p, tn), jnp.float32)],
        ),
        compiler_params=pltpu.CompilerParams(
            dimension_semantics=("parallel",),
            vmem_limit_bytes=32 * 1024 * 1024,
        ),
        cost_estimate=pl.CostEstimate(
            flops=flops, transcendentals=0, bytes_accessed=bytes_accessed
        ),
    )(x_p, adj_p, w_p)

    out = out_p[:N, :f_out].astype(out_dtype)
    if bias is not None:
        # Module default is bias=False; plain broadcast add if provided
        # (PyTorch bias parameter is shaped (1, 1, F_out)).
        out = out + jnp.reshape(bias, (1, f_out))
    return out


if __name__ == "__main__":
    # Shapes matching the ML-GCN use of this layer: 80 label nodes,
    # 300-dim word-embedding features, first GCN layer 300 -> 1024.
    N = 80
    F_IN = 300
    F_OUT = 1024

    key = jax.random.PRNGKey(0)
    k_x, k_adj, k_w = jax.random.split(key, 3)

    # Deterministic parameter init mirroring reset_parameters():
    #   stdv = 1 / sqrt(out_features); weight ~ U(-stdv, stdv)
    stdv = 1.0 / math.sqrt(F_OUT)
    weight = jax.random.uniform(
        k_w, (F_IN, F_OUT), dtype=jnp.float32, minval=-stdv, maxval=stdv
    )
    # bias=False (module default) -> no bias parameter.
    # TODO(synk): nn.Dropout is instantiated in __init__ but never applied in
    # forward, so it is intentionally omitted here.

    x = jax.random.normal(k_x, (N, F_IN), dtype=jnp.float32)
    adj = jax.random.uniform(k_adj, (N, N), dtype=jnp.float32)

    out = graph_convolution(x, adj, weight)
    out = jax.block_until_ready(out)
    assert out.shape == (N, F_OUT)

    # Reference 1: same mixed-precision recipe in plain JAX (bf16 operands for
    # phase 1, f32 support, f32 phase 2).  Tight tolerance validates the
    # fused tiling / padding logic.
    sup_ref = jnp.dot(
        x.astype(jnp.bfloat16),
        weight.astype(jnp.bfloat16),
        preferred_element_type=jnp.float32,
    )
    ref_mixed = jnp.dot(adj, sup_ref, precision=jax.lax.Precision.HIGHEST)
    assert jnp.allclose(out, ref_mixed, atol=1e-2, rtol=1e-2)

    # Reference 2: full-f32 reference (loose tolerance for bf16 operand error).
    ref_f32 = adj @ (x @ weight)
    assert jnp.allclose(out, ref_f32, atol=0.2, rtol=0.05)

    print("KERNEL_OK")
</pallas_src>

<mosaic_0001>
module attributes {stable_mosaic.version = 11 : i64} {
  func.func @_fused_gcn_kernel(%arg0: i32, %arg1: memref<128x384xbf16, #tpu.memory_space<vmem>>, %arg2: memref<128x128xf32, #tpu.memory_space<vmem>>, %arg3: memref<384x512xbf16, #tpu.memory_space<vmem>>, %arg4: memref<128x512xf32, #tpu.memory_space<vmem>>, %arg5: memref<128x512xf32, #tpu.memory_space<vmem>>) attributes {dimension_semantics = [#tpu.dimension_semantics<parallel>], iteration_bounds = array<i64: 2>, scalar_prefetch = 0 : i64, scratch_operands = 1 : i64, tpu.core_type = #tpu.core_type<tc>, window_params = [{pipeline_mode = #tpu.pipeline_mode<synchronous>, transform_indices = @transform_0, window_bounds = array<i64: 128, 384>}, {pipeline_mode = #tpu.pipeline_mode<synchronous>, transform_indices = @transform_1, window_bounds = array<i64: 128, 128>}, {transform_indices = @transform_2, window_bounds = array<i64: 384, 512>}, {transform_indices = @transform_3, window_bounds = array<i64: 128, 512>}]} {
    %c0 = arith.constant 0 : index
    %c0_0 = arith.constant 0 : index
    %0 = vector.load %arg1[%c0, %c0_0] : memref<128x384xbf16, #tpu.memory_space<vmem>>, vector<128x384xbf16>
    %c0_1 = arith.constant 0 : index
    %c0_2 = arith.constant 0 : index
    %1 = vector.load %arg3[%c0_1, %c0_2] : memref<384x512xbf16, #tpu.memory_space<vmem>>, vector<384x512xbf16>
    %cst = arith.constant dense<0.000000e+00> : vector<128x512xf32>
    %2 = tpu.matmul %0, %1, %cst {dimension_numbers = #tpu.dot_dimension_numbers<[1], [0], [0], [1], [0, 0, 1, 1], [], []>} : vector<128x384xbf16>, vector<384x512xbf16>, vector<128x512xf32> -> vector<128x512xf32>
    %c0_3 = arith.constant 0 : index
    %c0_4 = arith.constant 0 : index
    %3 = vector.load %arg5[%c0_3, %c0_4] : memref<128x512xf32, #tpu.memory_space<vmem>>, vector<128x512xf32>
    tpu.vector_store %arg5[%c0_3, %c0_4], %2 {strides = array<i32>} : memref<128x512xf32, #tpu.memory_space<vmem>>, vector<128x512xf32>,
    %c0_5 = arith.constant 0 : index
    %c0_6 = arith.constant 0 : index
    %4 = vector.load %arg2[%c0_5, %c0_6] : memref<128x128xf32, #tpu.memory_space<vmem>>, vector<128x128xf32>
    %c0_7 = arith.constant 0 : index
    %c0_8 = arith.constant 0 : index
    %5 = vector.load %arg5[%c0_7, %c0_8] : memref<128x512xf32, #tpu.memory_space<vmem>>, vector<128x512xf32>
    %cst_9 = arith.constant dense<0.000000e+00> : vector<128x512xf32>
    %6 = tpu.matmul %4, %5, %cst_9 {dimension_numbers = #tpu.dot_dimension_numbers<[1], [0], [0], [1], [0, 0, 1, 1], [], []>} : vector<128x128xf32>, vector<128x512xf32>, vector<128x512xf32> -> vector<128x512xf32>
    %c0_10 = arith.constant 0 : index
    %c0_11 = arith.constant 0 : index
    %7 = vector.load %arg4[%c0_10, %c0_11] : memref<128x512xf32, #tpu.memory_space<vmem>>, vector<128x512xf32>
    tpu.vector_store %arg4[%c0_10, %c0_11], %6 {strides = array<i32>} : memref<128x512xf32, #tpu.memory_space<vmem>>, vector<128x512xf32>,
    return
  }
  func.func @transform_0(%arg0: i32) -> (i32, i32) {
    %c0_i32 = arith.constant 0 : i32
    %c0_i32_0 = arith.constant 0 : i32
    %c0_i32_1 = arith.constant 0 : i32
    return %c0_i32, %c0_i32_0 : i32, i32
  }
  func.func @transform_1(%arg0: i32) -> (i32, i32) {
    %c0_i32 = arith.constant 0 : i32
    %c0_i32_0 = arith.constant 0 : i32
    %c0_i32_1 = arith.constant 0 : i32
    return %c0_i32, %c0_i32_0 : i32, i32
  }
  func.func @transform_2(%arg0: i32) -> (i32, i32) {
    %c0_i32 = arith.constant 0 : i32
    %c0_i32_0 = arith.constant 0 : i32
    return %c0_i32, %arg0 : i32, i32
  }
  func.func @transform_3(%arg0: i32) -> (i32, i32) {
    %c0_i32 = arith.constant 0 : i32
    %c0_i32_0 = arith.constant 0 : i32
    return %c0_i32, %arg0 : i32, i32
  }
}

</mosaic_0001>

<llo_original>
// kernel: tpu_custom_call.1
$region0: #{tpu_custom_call.1}
  #allocation0 [shape = 'u32[]', space=smem, size = 0x4, offset = 0x4, fixed_abs, tag = 'smem constant byte address 0x4 - core index']
  #allocation1 [shape = 'u32[72,128]{1,0:T(1,128)}', space=vmem, size = 0x9000, scoped, tag = 'internal scratch']
  #allocation2 [shape = 'f32[128,512]{1,0:T(8,128)}', space=vmem, size = 0x40000, scoped, tag = 'scratch operand']
  %s0 = inlined_call_operand.hbm [shape: bf16[128,384], index: 0, kind: input, shape index: {}]
  %s1 = inlined_call_operand.hbm [shape: f32[128,128], index: 1, kind: input, shape index: {}]
  %s2 = inlined_call_operand.hbm [shape: bf16[384,1024], index: 2, kind: input, shape index: {}]
  %s3 = inlined_call_operand.hbm [shape: f32[128,1024], index: 3, kind: output, shape index: {}]
  %s4 = sld [smem:[#allocation0]]
  $region57: #{tpu_custom_call.1} parent=0
    _
  %s6 = ssub.s32 1, %s4
  %s7 = scalar_select 0, %s6, %s4
  $region1: #{tpu_custom_call.1} parent=0
    #allocation3 [shape = 'u8[98304]{0}', space=vmem, size = 0x18000, scoped, tag = 'input window, operand 0, single buffered']
    #allocation4 [shape = 's32[2]{0}', space=sflag, size = 0x8, scoped, tag = 'scoped memory for tpu_custom_call.1']
    #allocation5 [shape = 's32[2]{0}', space=sflag, size = 0x8, scoped, tag = 'scoped memory for tpu_custom_call.1']
    #allocation6 [shape = 'u8[65536]{0}', space=vmem, size = 0x10000, scoped, tag = 'input window, operand 1, single buffered']
    #allocation7 [shape = 's32[1]{0}', space=sflag, size = 0x4, scoped, tag = 'scoped memory for tpu_custom_call.1']
    #allocation8 [shape = 'u8[786432]{0}', space=vmem, size = 0xc0000, scoped, tag = 'input window, operand 2']
    #allocation9 [shape = 'u8[524288]{0}', space=vmem, size = 0x80000, scoped, tag = 'output window, operand 0']
    %8 = vsyncpa [#allocation4], 0
    %9 = vsyncpa [#allocation7], 0
    %10 = vsyncpa [#allocation5], 0
    %s11 = scalar_lea.sflag [#allocation5], 1
    %12 = vsyncpa %s11, 0
    loop: start=0, step=1, limit=4
    $region2: #{tpu_custom_call.1} parent=1 // loop_pre_header
      _
    $region3: #{tpu_custom_call.1} parent=1 // loop_header
      %s14 = sphi 0, %s18
      %p15 = scmp.ge.s32.totalorder %s14, 4
      %s22 = sphi 0, %s22
      %s24 = sphi 0, %s22
      %s25 = sphi 0, %s24
      %s39 = sphi 0, %s25
      %s43 = sphi 0, %s43
      %s45 = sphi 0, %s43
      %s46 = sphi 0, %s45
      %s60 = sphi 0, %s46
      %s66 = sphi 0, %s68
      %s69 = sphi 0, %s66
      %s70 = sphi 0, %s69
      %s86 = sphi 0, %s70
      %s92 = sphi 0, %s94
      %s95 = sphi 0, %s92
      %s96 = sphi 0, %s95
      %s112 = sphi 0, %s96
    $region4: #{tpu_custom_call.1} parent=1 // loop_header_branch
      %17 = sbr.rel (%p15) target = $region8
    $region5: #{tpu_custom_call.1} parent=1 // loop_body
      %s19 = ssub.s32 %s14, 1
      %s20 = ssub.s32 %s14, 2
      %s21 = sadd.s32 %s14, 1
      %s23 = sadd.s32 %s22, 1
      %p26 = scmp.eq.s32.totalorder %s14, 1
      %p27 = scmp.ne.s32.totalorder %s22, %s24
      %p28 = scmp.eq.s32.totalorder %s14, 0
      %p29 = por %p27, %p28
      %p30 = scmp.ne.s32.totalorder %s22, %s24
      %p31 = scmp.eq.s32.totalorder %s19, 1
      %p32 = por %p30, %p31
      %p33 = scmp.ne.s32.totalorder %s24, %s25
      %p34 = scmp.eq.s32.totalorder %s19, 0
      %p35 = por %p33, %p34
      %p36 = scmp.ne.s32.totalorder %s24, %s25
      %p37 = scmp.eq.s32.totalorder %s20, 1
      %p38 = por %p36, %p37
      %p40 = scmp.ne.s32.totalorder %s25, %s39
      %p41 = scmp.eq.s32.totalorder %s20, 0
      %p42 = por %p40, %p41
      %s44 = sadd.s32 %s43, 1
      %p47 = scmp.eq.s32.totalorder %s14, 1
      %p48 = scmp.ne.s32.totalorder %s43, %s45
      %p49 = scmp.eq.s32.totalorder %s14, 0
      %p50 = por %p48, %p49
      %p51 = scmp.ne.s32.totalorder %s43, %s45
      %p52 = scmp.eq.s32.totalorder %s19, 1
      %p53 = por %p51, %p52
      %p54 = scmp.ne.s32.totalorder %s45, %s46
      %p55 = scmp.eq.s32.totalorder %s19, 0
      %p56 = por %p54, %p55
      %p57 = scmp.ne.s32.totalorder %s45, %s46
      %p58 = scmp.eq.s32.totalorder %s20, 1
      %p59 = por %p57, %p58
      %p61 = scmp.ne.s32.totalorder %s46, %s60
      %p62 = scmp.eq.s32.totalorder %s20, 0
      %p63 = por %p61, %p62
      %s64 = ssub.s32 %s14, %s21
      %p65 = scmp.eq.s32.totalorder %s64, 0
      %s67 = sadd.s32 %s66, 1
      %s68 = scalar_select %p65, %s66, %s67
      %p71 = pneg %p65
      %p72 = scmp.eq.s32.totalorder %s14, 1
      %p73 = por %p71, %p72
      %p74 = scmp.ne.s32.totalorder %s66, %s69
      %p75 = scmp.eq.s32.totalorder %s14, 0
      %p76 = por %p74, %p75
      %p77 = scmp.ne.s32.totalorder %s66, %s69
      %p78 = scmp.eq.s32.totalorder %s19, 1
      %p79 = por %p77, %p78
      %p80 = scmp.ne.s32.totalorder %s69, %s70
      %p81 = scmp.eq.s32.totalorder %s19, 0
      %p82 = por %p80, %p81
      %p83 = scmp.ne.s32.totalorder %s69, %s70
      %p84 = scmp.eq.s32.totalorder %s20, 1
      %p85 = por %p83, %p84
      %p87 = scmp.ne.s32.totalorder %s70, %s86
      %p88 = scmp.eq.s32.totalorder %s20, 0
      %p89 = por %p87, %p88
      %s90 = ssub.s32 %s14, %s21
      %p91 = scmp.eq.s32.totalorder %s90, 0
      %s93 = sadd.s32 %s92, 1
      %s94 = scalar_select %p91, %s92, %s93
      %p97 = pneg %p91
      %p98 = scmp.eq.s32.totalorder %s14, 1
      %p99 = por %p97, %p98
      %p100 = scmp.ne.s32.totalorder %s92, %s95
      %p101 = scmp.eq.s32.totalorder %s14, 0
      %p102 = por %p100, %p101
      %p103 = scmp.ne.s32.totalorder %s92, %s95
      %p104 = scmp.eq.s32.totalorder %s19, 1
      %p105 = por %p103, %p104
      %p106 = scmp.ne.s32.totalorder %s95, %s96
      %p107 = scmp.eq.s32.totalorder %s19, 0
      %p108 = por %p106, %p107
      %p109 = scmp.ne.s32.totalorder %s95, %s96
      %p110 = scmp.eq.s32.totalorder %s20, 1
      %p111 = por %p109, %p110
      %p113 = scmp.ne.s32.totalorder %s96, %s112
      %p114 = scmp.eq.s32.totalorder %s20, 0
      %p115 = por %p113, %p114
      %p116 = scmp.le.s32.totalorder 1, %s14
      %p117 = scmp.lt.s32.totalorder %s14, 3
      %p118 = pnand %p116, %p117
      %p119 = pneg %p118
      // Predicated region
      $region9: #{tpu_custom_call.1} parent=5 // pred_check
        _
      $region10: #{tpu_custom_call.1} parent=5 // pred_check_branch
        %121 = sbr.rel (%p118) target = $region12
      $region11: #{tpu_custom_call.1} parent=5 // pred_region
        %s122 = ssub.s32 %s14, 1
        // Predicated region
        $region13: #{tpu_custom_call.1} parent=11 // pred_check
          %p123 = pneg %p35
        $region14: #{tpu_custom_call.1} parent=11 // pred_check_branch
          %125 = sbr.rel (%p123) target = $region16
        $region15: #{tpu_custom_call.1} parent=11 // pred_region
          %127 = vsyncadd [#allocation4], 0
          %s128 = sshll.u32 %s0, 4
          %s129 = int_to_ptr.hbm [resolvable:$true] %s128
          %s130 = sshll.u32 [#allocation3], 4
          %s131 = int_to_ptr.vmem [resolvable:$true] %s130
          %136 = dma.hbm_to_vmem [thread:$0]  %s129, 3072, %s131, [#allocation4], 192, 192, 12
        $region16: #{tpu_custom_call.1} parent=11 // pred_fallthru
          _
        // Predicated region
        $region17: #{tpu_custom_call.1} parent=11 // pred_check
          %p137 = pneg %p56
        $region18: #{tpu_custom_call.1} parent=11 // pred_check_branch
          %139 = sbr.rel (%p137) target = $region20
        $region19: #{tpu_custom_call.1} parent=11 // pred_region
          %141 = vsyncadd [#allocation7], 0
          %s142 = sshll.u32 %s1, 4
          %s143 = int_to_ptr.hbm [resolvable:$true] %s142
          %s144 = sshll.u32 [#allocation6], 4
          %s145 = int_to_ptr.vmem [resolvable:$true] %s144
          %150 = dma.hbm_to_vmem [thread:$0]  %s143, 2048, %s145, [#allocation7], 128, 128, 8
        $region20: #{tpu_custom_call.1} parent=11 // pred_fallthru
          _
      $region12: #{tpu_custom_call.1} parent=5 // pred_fallthru
        _
      %p151 = scmp.lt.s32.totalorder %s14, 2
      // Predicated region
      $region21: #{tpu_custom_call.1} parent=5 // pred_check
        %p152 = pneg %p151
      $region22: #{tpu_custom_call.1} parent=5 // pred_check_branch
        %154 = sbr.rel (%p152) target = $region24
      $region23: #{tpu_custom_call.1} parent=5 // pred_region
        // Predicated region
        $region25: #{tpu_custom_call.1} parent=23 // pred_check
          %p155 = pneg %p76
        $region26: #{tpu_custom_call.1} parent=23 // pred_check_branch
          %157 = sbr.rel (%p155) target = $region28
        $region27: #{tpu_custom_call.1} parent=23 // pred_region
          %s158 = sand.u32 %s14, 1
          %s159 = scalar_lea.sflag [#allocation4], %s158
          %s160 = sand.u32 %s66, 1
          %s161 = smul.addr %s160, 768
          %s162 = scalar_lea.vmem [#allocation8], %s161
          %s163 = smul.u32 4, %s14
          %165 = vsyncadd %s159, 0
          %s166 = smul.addr %s163, 4
          %s167 = scalar_lea.hbm %s2, %s166
          %s168 = sshll.u32 %s167, 4
          %s169 = int_to_ptr.hbm [resolvable:$true] %s168
          %s170 = sshll.u32 %s162, 4
          %s171 = int_to_ptr.vmem [resolvable:$true] %s170
          %176 = dma.hbm_to_vmem [thread:$0]  %s169, 12288, %s171, %s159, 512, 256, 16
        $region28: #{tpu_custom_call.1} parent=23 // pred_fallthru
          _
      $region24: #{tpu_custom_call.1} parent=5 // pred_fallthru
        _
      %p177 = scmp.le.s32.totalorder 1, %s14
      %p178 = scmp.lt.s32.totalorder %s14, 3
      %p179 = pnand %p177, %p178
      %p180 = pneg %p179
      // Predicated region
      $region29: #{tpu_custom_call.1} parent=5 // pred_check
        _
      $region30: #{tpu_custom_call.1} parent=5 // pred_check_branch
        %182 = sbr.rel (%p179) target = $region32
      $region31: #{tpu_custom_call.1} parent=5 // pred_region
        %s183 = ssub.s32 %s14, 1
        // Predicated region
        $region33: #{tpu_custom_call.1} parent=31 // pred_check
          %p184 = pneg %p35
        $region34: #{tpu_custom_call.1} parent=31 // pred_check_branch
          %186 = sbr.rel (%p184) target = $region36
        $region35: #{tpu_custom_call.1} parent=31 // pred_region
          %188 = dma.done [#allocation4], 3072
        $region36: #{tpu_custom_call.1} parent=31 // pred_fallthru
          _
        // Predicated region
        $region37: #{tpu_custom_call.1} parent=31 // pred_check
          %p189 = pneg %p56
        $region38: #{tpu_custom_call.1} parent=31 // pred_check_branch
          %191 = sbr.rel (%p189) target = $region40
        $region39: #{tpu_custom_call.1} parent=31 // pred_region
          %193 = dma.done [#allocation7], 2048
        $region40: #{tpu_custom_call.1} parent=31 // pred_fallthru
          _
        %s194 = sand.u32 %s19, 1
        %s195 = scalar_lea.sflag [#allocation4], %s194
        %s196 = sand.u32 %s69, 1
        %s197 = smul.addr %s196, 768
        %s198 = scalar_lea.vmem [#allocation8], %s197
        // Predicated region
        $region41: #{tpu_custom_call.1} parent=31 // pred_check
          %p199 = pneg %p82
        $region42: #{tpu_custom_call.1} parent=31 // pred_check_branch
          %201 = sbr.rel (%p199) target = $region44
        $region43: #{tpu_custom_call.1} parent=31 // pred_region
          %203 = dma.done %s195, 12288
        $region44: #{tpu_custom_call.1} parent=31 // pred_fallthru
          _
        %p204 = pneg %p35
        %p205 = pneg %p32
        %p206 = pneg %p56
        %p207 = pneg %p53
        %s208 = sand.u32 %s19, 1
        %s209 = scalar_lea.sflag [#allocation4], %s208
        %s210 = sand.u32 %s69, 1
        %s211 = smul.addr %s210, 768
        %s212 = scalar_lea.vmem [#allocation8], %s211
        %p213 = pneg %p82
        %p214 = pneg %p79
        %p215 = pneg %p108
        %p216 = pneg %p105
        %s217 = sand.u32 %s95, 1
        %s218 = scalar_lea.sflag [#allocation5], %s217
        %s219 = sand.u32 %s95, 1
        %s220 = smul.addr %s219, 512
        %s221 = scalar_lea.vmem [#allocation9], %s220
        %s222 = smul.u32 4, %s19
        %s223 = smul.u32 4, %s19
        %v224 = vld [vmem:[#allocation3] sm:$0xff]
        %v225 = vld [vmem:[#allocation3 + $0x8] sm:$0xf]
        %v226 = vld [vmem:[#allocation3 + $0xc] sm:$0xff]
        %v227 = vld [vmem:[#allocation3 + $0x14] sm:$0xf]
        %v228 = vld [vmem:[#allocation3 + $0x18] sm:$0xff]
        %v229 = vld [vmem:[#allocation3 + $0x20] sm:$0xf]
        %v230 = vld [vmem:[#allocation3 + $0x24] sm:$0xff]
        %v231 = vld [vmem:[#allocation3 + $0x2c] sm:$0xf]
        %v232 = vld [vmem:[#allocation3 + $0x30] sm:$0xff]
        %v233 = vld [vmem:[#allocation3 + $0x38] sm:$0xf]
        %v234 = vld [vmem:[#allocation3 + $0x3c] sm:$0xff]
        %v235 = vld [vmem:[#allocation3 + $0x44] sm:$0xf]
        %v236 = vld [vmem:[#allocation3 + $0x48] sm:$0xff]
        %v237 = vld [vmem:[#allocation3 + $0x50] sm:$0xf]
        %v238 = vld [vmem:[#allocation3 + $0x54] sm:$0xff]
        %v239 = vld [vmem:[#allocation3 + $0x5c] sm:$0xf]
        %v240 = vld [vmem:[#allocation3 + $0x60] sm:$0xff]
        %v241 = vld [vmem:[#allocation3 + $0x68] sm:$0xf]
        %v242 = vld [vmem:[#allocation3 + $0x6c] sm:$0xff]
        %v243 = vld [vmem:[#allocation3 + $0x74] sm:$0xf]
        %v244 = vld [vmem:[#allocation3 + $0x78] sm:$0xff]
        %v245 = vld [vmem:[#allocation3 + $0x80] sm:$0xf]
        %v246 = vld [vmem:[#allocation3 + $0x84] sm:$0xff]
        %v247 = vld [vmem:[#allocation3 + $0x8c] sm:$0xf]
        %v248 = vld [vmem:[#allocation3 + $0x90] sm:$0xff]
        %v249 = vld [vmem:[#allocation3 + $0x98] sm:$0xf]
        %v250 = vld [vmem:[#allocation3 + $0x9c] sm:$0xff]
        %v251 = vld [vmem:[#allocation3 + $0xa4] sm:$0xf]
        %v252 = vld [vmem:[#allocation3 + $0xa8] sm:$0xff]
        %v253 = vld [vmem:[#allocation3 + $0xb0] sm:$0xf]
        %v254 = vld [vmem:[#allocation3 + $0xb4] sm:$0xff]
        %v255 = vld [vmem:[#allocation3 + $0xbc] sm:$0xf]
        %v256 = vld [vmem:[%s198] sm:$0xff]
        %v257 = vld [vmem:[%s198 + $0x8] sm:$0xff]
        %v258 = vld [vmem:[%s198 + $0x10] sm:$0xff]
        %v259 = vld [vmem:[%s198 + $0x18] sm:$0xff]
        %v260 = vld [vmem:[%s198 + $0x20] sm:$0xff]
        %v261 = vld [vmem:[%s198 + $0x28] sm:$0xff]
        %v262 = vld [vmem:[%s198 + $0x30] sm:$0xff]
        %v263 = vld [vmem:[%s198 + $0x38] sm:$0xff]
        %v264 = vld [vmem:[%s198 + $0x40] sm:$0xff]
        %v265 = vld [vmem:[%s198 + $0x48] sm:$0xff]
        %v266 = vld [vmem:[%s198 + $0x50] sm:$0xff]
        %v267 = vld [vmem:[%s198 + $0x58] sm:$0xff]
        %v268 = vld [vmem:[%s198 + $0x60] sm:$0xff]
        %v269 = vld [vmem:[%s198 + $0x68] sm:$0xff]
        %v270 = vld [vmem:[%s198 + $0x70] sm:$0xff]
        %v271 = vld [vmem:[%s198 + $0x78] sm:$0xff]
        %v272 = vld [vmem:[%s198 + $0x80] sm:$0xff]
        %v273 = vld [vmem:[%s198 + $0x88] sm:$0xff]
        %v274 = vld [vmem:[%s198 + $0x90] sm:$0xff]
        %v275 = vld [vmem:[%s198 + $0x98] sm:$0xff]
        %v276 = vld [vmem:[%s198 + $0xa0] sm:$0xff]
        %v277 = vld [vmem:[%s198 + $0xa8] sm:$0xff]
        %v278 = vld [vmem:[%s198 + $0xb0] sm:$0xff]
        %v279 = vld [vmem:[%s198 + $0xb8] sm:$0xff]
        %v280 = vld [vmem:[%s198 + $0xc0] sm:$0xff]
        %v281 = vld [vmem:[%s198 + $0xc8] sm:$0xff]
        %v282 = vld [vmem:[%s198 + $0xd0] sm:$0xff]
        %v283 = vld [vmem:[%s198 + $0xd8] sm:$0xff]
        %v284 = vld [vmem:[%s198 + $0xe0] sm:$0xff]
        %v285 = vld [vmem:[%s198 + $0xe8] sm:$0xff]
        %v286 = vld [vmem:[%s198 + $0xf0] sm:$0xff]
        %v287 = vld [vmem:[%s198 + $0xf8] sm:$0xff]
        %v288 = vld [vmem:[%s198 + $0x100] sm:$0xff]
        %v289 = vld [vmem:[%s198 + $0x108] sm:$0xff]
        %v290 = vld [vmem:[%s198 + $0x110] sm:$0xff]
        %v291 = vld [vmem:[%s198 + $0x118] sm:$0xff]
        %v292 = vld [vmem:[%s198 + $0x120] sm:$0xff]
        %v293 = vld [vmem:[%s198 + $0x128] sm:$0xff]
        %v294 = vld [vmem:[%s198 + $0x130] sm:$0xff]
        %v295 = vld [vmem:[%s198 + $0x138] sm:$0xff]
        %v296 = vld [vmem:[%s198 + $0x140] sm:$0xff]
        %v297 = vld [vmem:[%s198 + $0x148] sm:$0xff]
        %v298 = vld [vmem:[%s198 + $0x150] sm:$0xff]
        %v299 = vld [vmem:[%s198 + $0x158] sm:$0xff]
        %v300 = vld [vmem:[%s198 + $0x160] sm:$0xff]
        %v301 = vld [vmem:[%s198 + $0x168] sm:$0xff]
        %v302 = vld [vmem:[%s198 + $0x170] sm:$0xff]
        %v303 = vld [vmem:[%s198 + $0x178] sm:$0xff]
        %v304 = vld [vmem:[%s198 + $0x180] sm:$0xff]
        %v305 = vld [vmem:[%s198 + $0x188] sm:$0xff]
        %v306 = vld [vmem:[%s198 + $0x190] sm:$0xff]
        %v307 = vld [vmem:[%s198 + $0x198] sm:$0xff]
        %v308 = vld [vmem:[%s198 + $0x1a0] sm:$0xff]
        %v309 = vld [vmem:[%s198 + $0x1a8] sm:$0xff]
        %v310 = vld [vmem:[%s198 + $0x1b0] sm:$0xff]
        %v311 = vld [vmem:[%s198 + $0x1b8] sm:$0xff]
        %v312 = vld [vmem:[%s198 + $0x1c0] sm:$0xff]
        %v313 = vld [vmem:[%s198 + $0x1c8] sm:$0xff]
        %v314 = vld [vmem:[%s198 + $0x1d0] sm:$0xff]
        %v315 = vld [vmem:[%s198 + $0x1d8] sm:$0xff]
        %v316 = vld [vmem:[%s198 + $0x1e0] sm:$0xff]
        %v317 = vld [vmem:[%s198 + $0x1e8] sm:$0xff]
        %v318 = vld [vmem:[%s198 + $0x1f0] sm:$0xff]
        %v319 = vld [vmem:[%s198 + $0x1f8] sm:$0xff]
        %v320 = vld [vmem:[%s198 + $0x200] sm:$0xff]
        %v321 = vld [vmem:[%s198 + $0x208] sm:$0xff]
        %v322 = vld [vmem:[%s198 + $0x210] sm:$0xff]
        %v323 = vld [vmem:[%s198 + $0x218] sm:$0xff]
        %v324 = vld [vmem:[%s198 + $0x220] sm:$0xff]
        %v325 = vld [vmem:[%s198 + $0x228] sm:$0xff]
        %v326 = vld [vmem:[%s198 + $0x230] sm:$0xff]
        %v327 = vld [vmem:[%s198 + $0x238] sm:$0xff]
        %v328 = vld [vmem:[%s198 + $0x240] sm:$0xff]
        %v329 = vld [vmem:[%s198 + $0x248] sm:$0xff]
        %v330 = vld [vmem:[%s198 + $0x250] sm:$0xff]
        %v331 = vld [vmem:[%s198 + $0x258] sm:$0xff]
        %v332 = vld [vmem:[%s198 + $0x260] sm:$0xff]
        %v333 = vld [vmem:[%s198 + $0x268] sm:$0xff]
        %v334 = vld [vmem:[%s198 + $0x270] sm:$0xff]
        %v335 = vld [vmem:[%s198 + $0x278] sm:$0xff]
        %v336 = vld [vmem:[%s198 + $0x280] sm:$0xff]
        %v337 = vld [vmem:[%s198 + $0x288] sm:$0xff]
        %v338 = vld [vmem:[%s198 + $0x290] sm:$0xff]
        %v339 = vld [vmem:[%s198 + $0x298] sm:$0xff]
        %v340 = vld [vmem:[%s198 + $0x2a0] sm:$0xff]
        %v341 = vld [vmem:[%s198 + $0x2a8] sm:$0xff]
        %v342 = vld [vmem:[%s198 + $0x2b0] sm:$0xff]
        %v343 = vld [vmem:[%s198 + $0x2b8] sm:$0xff]
        %v344 = vld [vmem:[%s198 + $0x2c0] sm:$0xff]
        %v345 = vld [vmem:[%s198 + $0x2c8] sm:$0xff]
        %v346 = vld [vmem:[%s198 + $0x2d0] sm:$0xff]
        %v347 = vld [vmem:[%s198 + $0x2d8] sm:$0xff]
        %v348 = vld [vmem:[%s198 + $0x2e0] sm:$0xff]
        %v349 = vld [vmem:[%s198 + $0x2e8] sm:$0xff]
        %v350 = vld [vmem:[%s198 + $0x2f0] sm:$0xff]
        %v351 = vld [vmem:[%s198 + $0x2f8] sm:$0xff]
        %v384 = vunpack.c.l.b16 %v224
        %v385 = vunpack.c.h.b16 %v224
        %v386 = vunpack.c.l.b16 %v225
        %v387 = vunpack.c.l.b16 %v226
        %v388 = vunpack.c.h.b16 %v226
        %v389 = vunpack.c.l.b16 %v227
        %v390 = vunpack.c.l.b16 %v228
        %v391 = vunpack.c.h.b16 %v228
        %v392 = vunpack.c.l.b16 %v229
        %v393 = vunpack.c.l.b16 %v230
        %v394 = vunpack.c.h.b16 %v230
        %v395 = vunpack.c.l.b16 %v231
        %v396 = vunpack.c.l.b16 %v232
        %v397 = vunpack.c.h.b16 %v232
        %v398 = vunpack.c.l.b16 %v233
        %v399 = vunpack.c.l.b16 %v234
        %v400 = vunpack.c.h.b16 %v234
        %v401 = vunpack.c.l.b16 %v235
        %v402 = vunpack.c.l.b16 %v236
        %v403 = vunpack.c.h.b16 %v236
        %v404 = vunpack.c.l.b16 %v237
        %v405 = vunpack.c.l.b16 %v238
        %v406 = vunpack.c.h.b16 %v238
        %v407 = vunpack.c.l.b16 %v239
        %v408 = vunpack.c.l.b16 %v240
        %v409 = vunpack.c.h.b16 %v240
        %v410 = vunpack.c.l.b16 %v241
        %v411 = vunpack.c.l.b16 %v242
        %v412 = vunpack.c.h.b16 %v242
        %v413 = vunpack.c.l.b16 %v243
        %v414 = vunpack.c.l.b16 %v244
        %v415 = vunpack.c.h.b16 %v244
        %v416 = vunpack.c.l.b16 %v245
        %v417 = vunpack.c.l.b16 %v246
        %v418 = vunpack.c.h.b16 %v246
        %v419 = vunpack.c.l.b16 %v247
        %v420 = vunpack.c.l.b16 %v248
        %v421 = vunpack.c.h.b16 %v248
        %v422 = vunpack.c.l.b16 %v249
        %v423 = vunpack.c.l.b16 %v250
        %v424 = vunpack.c.h.b16 %v250
        %v425 = vunpack.c.l.b16 %v251
        %v426 = vunpack.c.l.b16 %v252
        %v427 = vunpack.c.h.b16 %v252
        %v428 = vunpack.c.l.b16 %v253
        %v429 = vunpack.c.l.b16 %v254
        %v430 = vunpack.c.h.b16 %v254
        %v431 = vunpack.c.l.b16 %v255
        %v432 = vpack.c.b16 %v387, %v384
        %v433 = vpack.c.b16 %v388, %v385
        %v434 = vpack.c.b16 %v389, %v386
        %v435 = vpack.c.b16 %v393, %v390
        %v436 = vpack.c.b16 %v394, %v391
        %v437 = vpack.c.b16 %v395, %v392
        %v438 = vpack.c.b16 %v399, %v396
        %v439 = vpack.c.b16 %v400, %v397
        %v440 = vpack.c.b16 %v401, %v398
        %v441 = vpack.c.b16 %v405, %v402
        %v442 = vpack.c.b16 %v406, %v403
        %v443 = vpack.c.b16 %v407, %v404
        %v444 = vpack.c.b16 %v411, %v408
        %v445 = vpack.c.b16 %v412, %v409
        %v446 = vpack.c.b16 %v413, %v410
        %v447 = vpack.c.b16 %v417, %v414
        %v448 = vpack.c.b16 %v418, %v415
        %v449 = vpack.c.b16 %v419, %v416
        %v450 = vpack.c.b16 %v423, %v420
        %v451 = vpack.c.b16 %v424, %v421
        %v452 = vpack.c.b16 %v425, %v422
        %v453 = vpack.c.b16 %v429, %v426
        %v454 = vpack.c.b16 %v430, %v427
        %v455 = vpack.c.b16 %v431, %v428
        %v576 = vunpack.c.l.b16 %v256
        %v577 = vunpack.c.h.b16 %v256
        %v578 = vunpack.c.l.b16 %v257
        %v579 = vunpack.c.h.b16 %v257
        %v580 = vunpack.c.l.b16 %v258
        %v581 = vunpack.c.h.b16 %v258
        %v582 = vunpack.c.l.b16 %v259
        %v583 = vunpack.c.h.b16 %v259
        %v584 = vunpack.c.l.b16 %v260
        %v585 = vunpack.c.h.b16 %v260
        %v586 = vunpack.c.l.b16 %v261
        %v587 = vunpack.c.h.b16 %v261
        %v588 = vunpack.c.l.b16 %v262
        %v589 = vunpack.c.h.b16 %v262
        %v590 = vunpack.c.l.b16 %v263
        %v591 = vunpack.c.h.b16 %v263
        %v592 = vunpack.c.l.b16 %v264
        %v593 = vunpack.c.h.b16 %v264
        %v594 = vunpack.c.l.b16 %v265
        %v595 = vunpack.c.h.b16 %v265
        %v596 = vunpack.c.l.b16 %v266
        %v597 = vunpack.c.h.b16 %v266
        %v598 = vunpack.c.l.b16 %v267
        %v599 = vunpack.c.h.b16 %v267
        %v600 = vunpack.c.l.b16 %v268
        %v601 = vunpack.c.h.b16 %v268
        %v602 = vunpack.c.l.b16 %v269
        %v603 = vunpack.c.h.b16 %v269
        %v604 = vunpack.c.l.b16 %v270
        %v605 = vunpack.c.h.b16 %v270
        %v606 = vunpack.c.l.b16 %v271
        %v607 = vunpack.c.h.b16 %v271
        %v608 = vunpack.c.l.b16 %v272
        %v609 = vunpack.c.h.b16 %v272
        %v610 = vunpack.c.l.b16 %v273
        %v611 = vunpack.c.h.b16 %v273
        %v612 = vunpack.c.l.b16 %v274
        %v613 = vunpack.c.h.b16 %v274
        %v614 = vunpack.c.l.b16 %v275
        %v615 = vunpack.c.h.b16 %v275
        %v616 = vunpack.c.l.b16 %v276
        %v617 = vunpack.c.h.b16 %v276
        %v618 = vunpack.c.l.b16 %v277
        %v619 = vunpack.c.h.b16 %v277
        %v620 = vunpack.c.l.b16 %v278
        %v621 = vunpack.c.h.b16 %v278
        %v622 = vunpack.c.l.b16 %v279
        %v623 = vunpack.c.h.b16 %v279
        %v624 = vunpack.c.l.b16 %v280
        %v625 = vunpack.c.h.b16 %v280
        %v626 = vunpack.c.l.b16 %v281
        %v627 = vunpack.c.h.b16 %v281
        %v628 = vunpack.c.l.b16 %v282
        %v629 = vunpack.c.h.b16 %v282
        %v630 = vunpack.c.l.b16 %v283
        %v631 = vunpack.c.h.b16 %v283
        %v632 = vunpack.c.l.b16 %v284
        %v633 = vunpack.c.h.b16 %v284
        %v634 = vunpack.c.l.b16 %v285
        %v635 = vunpack.c.h.b16 %v285
        %v636 = vunpack.c.l.b16 %v286
        %v637 = vunpack.c.h.b16 %v286
        %v638 = vunpack.c.l.b16 %v287
        %v639 = vunpack.c.h.b16 %v287
        %v640 = vunpack.c.l.b16 %v288
        %v641 = vunpack.c.h.b16 %v288
        %v642 = vunpack.c.l.b16 %v289
        %v643 = vunpack.c.h.b16 %v289
        %v644 = vunpack.c.l.b16 %v290
        %v645 = vunpack.c.h.b16 %v290
        %v646 = vunpack.c.l.b16 %v291
        %v647 = vunpack.c.h.b16 %v291
        %v648 = vunpack.c.l.b16 %v292
        %v649 = vunpack.c.h.b16 %v292
        %v650 = vunpack.c.l.b16 %v293
        %v651 = vunpack.c.h.b16 %v293
        %v652 = vunpack.c.l.b16 %v294
        %v653 = vunpack.c.h.b16 %v294
        %v654 = vunpack.c.l.b16 %v295
        %v655 = vunpack.c.h.b16 %v295
        %v656 = vunpack.c.l.b16 %v296
        %v657 = vunpack.c.h.b16 %v296
        %v658 = vunpack.c.l.b16 %v297
        %v659 = vunpack.c.h.b16 %v297
        %v660 = vunpack.c.l.b16 %v298
        %v661 = vunpack.c.h.b16 %v298
        %v662 = vunpack.c.l.b16 %v299
        %v663 = vunpack.c.h.b16 %v299
        %v664 = vunpack.c.l.b16 %v300
        %v665 = vunpack.c.h.b16 %v300
        %v666 = vunpack.c.l.b16 %v301
        %v667 = vunpack.c.h.b16 %v301
        %v668 = vunpack.c.l.b16 %v302
        %v669 = vunpack.c.h.b16 %v302
        %v670 = vunpack.c.l.b16 %v303
        %v671 = vunpack.c.h.b16 %v303
        %v672 = vunpack.c.l.b16 %v304
        %v673 = vunpack.c.h.b16 %v304
        %v674 = vunpack.c.l.b16 %v305
        %v675 = vunpack.c.h.b16 %v305
        %v676 = vunpack.c.l.b16 %v306
        %v677 = vunpack.c.h.b16 %v306
        %v678 = vunpack.c.l.b16 %v307
        %v679 = vunpack.c.h.b16 %v307
        %v680 = vunpack.c.l.b16 %v308
        %v681 = vunpack.c.h.b16 %v308
        %v682 = vunpack.c.l.b16 %v309
        %v683 = vunpack.c.h.b16 %v309
        %v684 = vunpack.c.l.b16 %v310
        %v685 = vunpack.c.h.b16 %v310
        %v686 = vunpack.c.l.b16 %v311
        %v687 = vunpack.c.h.b16 %v311
        %v688 = vunpack.c.l.b16 %v312
        %v689 = vunpack.c.h.b16 %v312
        %v690 = vunpack.c.l.b16 %v313
        %v691 = vunpack.c.h.b16 %v313
        %v692 = vunpack.c.l.b16 %v314
        %v693 = vunpack.c.h.b16 %v314
        %v694 = vunpack.c.l.b16 %v315
        %v695 = vunpack.c.h.b16 %v315
        %v696 = vunpack.c.l.b16 %v316
        %v697 = vunpack.c.h.b16 %v316
        %v698 = vunpack.c.l.b16 %v317
        %v699 = vunpack.c.h.b16 %v317
        %v700 = vunpack.c.l.b16 %v318
        %v701 = vunpack.c.h.b16 %v318
        %v702 = vunpack.c.l.b16 %v319
        %v703 = vunpack.c.h.b16 %v319
        %v704 = vunpack.c.l.b16 %v320
        %v705 = vunpack.c.h.b16 %v320
        %v706 = vunpack.c.l.b16 %v321
        %v707 = vunpack.c.h.b16 %v321
        %v708 = vunpack.c.l.b16 %v322
        %v709 = vunpack.c.h.b16 %v322
        %v710 = vunpack.c.l.b16 %v323
        %v711 = vunpack.c.h.b16 %v323
        %v712 = vunpack.c.l.b16 %v324
        %v713 = vunpack.c.h.b16 %v324
        %v714 = vunpack.c.l.b16 %v325
        %v715 = vunpack.c.h.b16 %v325
        %v716 = vunpack.c.l.b16 %v326
        %v717 = vunpack.c.h.b16 %v326
        %v718 = vunpack.c.l.b16 %v327
        %v719 = vunpack.c.h.b16 %v327
        %v720 = vunpack.c.l.b16 %v328
        %v721 = vunpack.c.h.b16 %v328
        %v722 = vunpack.c.l.b16 %v329
        %v723 = vunpack.c.h.b16 %v329
        %v724 = vunpack.c.l.b16 %v330
        %v725 = vunpack.c.h.b16 %v330
        %v726 = vunpack.c.l.b16 %v331
        %v727 = vunpack.c.h.b16 %v331
        %v728 = vunpack.c.l.b16 %v332
        %v729 = vunpack.c.h.b16 %v332
        %v730 = vunpack.c.l.b16 %v333
        %v731 = vunpack.c.h.b16 %v333
        %v732 = vunpack.c.l.b16 %v334
        %v733 = vunpack.c.h.b16 %v334
        %v734 = vunpack.c.l.b16 %v335
        %v735 = vunpack.c.h.b16 %v335
        %v736 = vunpack.c.l.b16 %v336
        %v737 = vunpack.c.h.b16 %v336
        %v738 = vunpack.c.l.b16 %v337
        %v739 = vunpack.c.h.b16 %v337
        %v740 = vunpack.c.l.b16 %v338
        %v741 = vunpack.c.h.b16 %v338
        %v742 = vunpack.c.l.b16 %v339
        %v743 = vunpack.c.h.b16 %v339
        %v744 = vunpack.c.l.b16 %v340
        %v745 = vunpack.c.h.b16 %v340
        %v746 = vunpack.c.l.b16 %v341
        %v747 = vunpack.c.h.b16 %v341
        %v748 = vunpack.c.l.b16 %v342
        %v749 = vunpack.c.h.b16 %v342
        %v750 = vunpack.c.l.b16 %v343
        %v751 = vunpack.c.h.b16 %v343
        %v752 = vunpack.c.l.b16 %v344
        %v753 = vunpack.c.h.b16 %v344
        %v754 = vunpack.c.l.b16 %v345
        %v755 = vunpack.c.h.b16 %v345
        %v756 = vunpack.c.l.b16 %v346
        %v757 = vunpack.c.h.b16 %v346
        %v758 = vunpack.c.l.b16 %v347
        %v759 = vunpack.c.h.b16 %v347
        %v760 = vunpack.c.l.b16 %v348
        %v761 = vunpack.c.h.b16 %v348
        %v762 = vunpack.c.l.b16 %v349
        %v763 = vunpack.c.h.b16 %v349
        %v764 = vunpack.c.l.b16 %v350
        %v765 = vunpack.c.h.b16 %v350
        %v766 = vunpack.c.l.b16 %v351
        %v767 = vunpack.c.h.b16 %v351
        %v768 = vpack.c.b16 %v580, %v576
        %v769 = vpack.c.b16 %v581, %v577
        %v770 = vpack.c.b16 %v582, %v578
        %v771 = vpack.c.b16 %v583, %v579
        %v772 = vpack.c.b16 %v588, %v584
        %v773 = vpack.c.b16 %v589, %v585
        %v774 = vpack.c.b16 %v590, %v586
        %v775 = vpack.c.b16 %v591, %v587
        %v776 = vpack.c.b16 %v596, %v592
        %v777 = vpack.c.b16 %v597, %v593
        %v778 = vpack.c.b16 %v598, %v594
        %v779 = vpack.c.b16 %v599, %v595
        %v780 = vpack.c.b16 %v604, %v600
        %v781 = vpack.c.b16 %v605, %v601
        %v782 = vpack.c.b16 %v606, %v602
        %v783 = vpack.c.b16 %v607, %v603
        %v784 = vpack.c.b16 %v612, %v608
        %v785 = vpack.c.b16 %v613, %v609
        %v786 = vpack.c.b16 %v614, %v610
        %v787 = vpack.c.b16 %v615, %v611
        %v788 = vpack.c.b16 %v620, %v616
        %v789 = vpack.c.b16 %v621, %v617
        %v790 = vpack.c.b16 %v622, %v618
        %v791 = vpack.c.b16 %v623, %v619
        %v792 = vpack.c.b16 %v628, %v624
        %v793 = vpack.c.b16 %v629, %v625
        %v794 = vpack.c.b16 %v630, %v626
        %v795 = vpack.c.b16 %v631, %v627
        %v796 = vpack.c.b16 %v636, %v632
        %v797 = vpack.c.b16 %v637, %v633
        %v798 = vpack.c.b16 %v638, %v634
        %v799 = vpack.c.b16 %v639, %v635
        %v800 = vpack.c.b16 %v644, %v640
        %v801 = vpack.c.b16 %v645, %v641
        %v802 = vpack.c.b16 %v646, %v642
        %v803 = vpack.c.b16 %v647, %v643
        %v804 = vpack.c.b16 %v652, %v648
        %v805 = vpack.c.b16 %v653, %v649
        %v806 = vpack.c.b16 %v654, %v650
        %v807 = vpack.c.b16 %v655, %v651
        %v808 = vpack.c.b16 %v660, %v656
        %v809 = vpack.c.b16 %v661, %v657
        %v810 = vpack.c.b16 %v662, %v658
        %v811 = vpack.c.b16 %v663, %v659
        %v812 = vpack.c.b16 %v668, %v664
        %v813 = vpack.c.b16 %v669, %v665
        %v814 = vpack.c.b16 %v670, %v666
        %v815 = vpack.c.b16 %v671, %v667
        %v816 = vpack.c.b16 %v676, %v672
        %v817 = vpack.c.b16 %v677, %v673
        %v818 = vpack.c.b16 %v678, %v674
        %v819 = vpack.c.b16 %v679, %v675
        %v820 = vpack.c.b16 %v684, %v680
        %v821 = vpack.c.b16 %v685, %v681
        %v822 = vpack.c.b16 %v686, %v682
        %v823 = vpack.c.b16 %v687, %v683
        %v824 = vpack.c.b16 %v692, %v688
        %v825 = vpack.c.b16 %v693, %v689
        %v826 = vpack.c.b16 %v694, %v690
        %v827 = vpack.c.b16 %v695, %v691
        %v828 = vpack.c.b16 %v700, %v696
        %v829 = vpack.c.b16 %v701, %v697
        %v830 = vpack.c.b16 %v702, %v698
        %v831 = vpack.c.b16 %v703, %v699
        %v832 = vpack.c.b16 %v708, %v704
        %v833 = vpack.c.b16 %v709, %v705
        %v834 = vpack.c.b16 %v710, %v706
        %v835 = vpack.c.b16 %v711, %v707
        %v836 = vpack.c.b16 %v716, %v712
        %v837 = vpack.c.b16 %v717, %v713
        %v838 = vpack.c.b16 %v718, %v714
        %v839 = vpack.c.b16 %v719, %v715
        %v840 = vpack.c.b16 %v724, %v720
        %v841 = vpack.c.b16 %v725, %v721
        %v842 = vpack.c.b16 %v726, %v722
        %v843 = vpack.c.b16 %v727, %v723
        %v844 = vpack.c.b16 %v732, %v728
        %v845 = vpack.c.b16 %v733, %v729
        %v846 = vpack.c.b16 %v734, %v730
        %v847 = vpack.c.b16 %v735, %v731
        %v848 = vpack.c.b16 %v740, %v736
        %v849 = vpack.c.b16 %v741, %v737
        %v850 = vpack.c.b16 %v742, %v738
        %v851 = vpack.c.b16 %v743, %v739
        %v852 = vpack.c.b16 %v748, %v744
        %v853 = vpack.c.b16 %v749, %v745
        %v854 = vpack.c.b16 %v750, %v746
        %v855 = vpack.c.b16 %v751, %v747
        %v856 = vpack.c.b16 %v756, %v752
        %v857 = vpack.c.b16 %v757, %v753
        %v858 = vpack.c.b16 %v758, %v754
        %v859 = vpack.c.b16 %v759, %v755
        %v860 = vpack.c.b16 %v764, %v760
        %v861 = vpack.c.b16 %v765, %v761
        %v862 = vpack.c.b16 %v766, %v762
        %v863 = vpack.c.b16 %v767, %v763
        %960 = vmatpush.bf16.msra.mxu0 %v796
        %961 = vmatpush.bf16.msra.mxu0 %v792
        %962 = vmatpush.bf16.msra.mxu0 %v788
        %963 = vmatpush.bf16.msra.mxu0 %v784
        %964 = vmatpush.bf16.msra.mxu0 %v780
        %965 = vmatpush.bf16.msra.mxu0 %v776
        %966 = vmatpush.bf16.msra.mxu0 %v772
        %967 = vmatpush.bf16.msra.mxu0 %v768
        %968 = vmatmul.bf16.gmra.mxu0 %v432
        %v969 = vpop.f32.mrf.mxu0
        %v970 = vadd.f32 0.0, %v969
        %v971 = vpop.f32.mrf.mxu0
        %v972 = vadd.f32 0.0, %v971
        %973 = vmatmul.bf16.gmra.mxu0 %v435
        %v974 = vpop.f32.mrf.mxu0
        %v975 = vadd.f32 0.0, %v974
        %v976 = vpop.f32.mrf.mxu0
        %v977 = vadd.f32 0.0, %v976
        %978 = vmatmul.bf16.gmra.mxu0 %v438
        %v979 = vpop.f32.mrf.mxu0
        %v980 = vadd.f32 0.0, %v979
        %v981 = vpop.f32.mrf.mxu0
        %v982 = vadd.f32 0.0, %v981
        %983 = vmatmul.bf16.gmra.mxu0 %v441
        %v984 = vpop.f32.mrf.mxu0
        %v985 = vadd.f32 0.0, %v984
        %v986 = vpop.f32.mrf.mxu0
        %v987 = vadd.f32 0.0, %v986
        %988 = vmatmul.bf16.gmra.mxu0 %v444
        %v989 = vpop.f32.mrf.mxu0
        %v990 = vadd.f32 0.0, %v989
        %v991 = vpop.f32.mrf.mxu0
        %v992 = vadd.f32 0.0, %v991
        %993 = vmatmul.bf16.gmra.mxu0 %v447
        %v994 = vpop.f32.mrf.mxu0
        %v995 = vadd.f32 0.0, %v994
        %v996 = vpop.f32.mrf.mxu0
        %v997 = vadd.f32 0.0, %v996
        %998 = vmatmul.bf16.gmra.mxu0 %v450
        %v999 = vpop.f32.mrf.mxu0
        %v1000 = vadd.f32 0.0, %v999
        %v1001 = vpop.f32.mrf.mxu0
        %v1002 = vadd.f32 0.0, %v1001
        %1003 = vmatmul.bf16.gmra.mxu0 %v453
        %v1004 = vpop.f32.mrf.mxu0
        %v1005 = vadd.f32 0.0, %v1004
        %v1006 = vpop.f32.mrf.mxu0
        %v1007 = vadd.f32 0.0, %v1006
        %1008 = vdwg.mxu0
        %1009 = vmatpush.bf16.msra.mxu0 %v828
        %1010 = vmatpush.bf16.msra.mxu0 %v824
        %1011 = vmatpush.bf16.msra.mxu0 %v820
        %1012 = vmatpush.bf16.msra.mxu0 %v816
        %1013 = vmatpush.bf16.msra.mxu0 %v812
        %1014 = vmatpush.bf16.msra.mxu0 %v808
        %1015 = vmatpush.bf16.msra.mxu0 %v804
        %1016 = vmatpush.bf16.msra.mxu0 %v800
        %1017 = vmatmul.bf16.gmra.mxu0 %v433
        %v1018 = vpop.f32.mrf.mxu0
        %v1019 = vadd.f32 %v970, %v1018
        %v1020 = vpop.f32.mrf.mxu0
        %v1021 = vadd.f32 %v972, %v1020
        %1022 = vmatmul.bf16.gmra.mxu0 %v436
        %v1023 = vpop.f32.mrf.mxu0
        %v1024 = vadd.f32 %v975, %v1023
        %v1025 = vpop.f32.mrf.mxu0
        %v1026 = vadd.f32 %v977, %v1025
        %1027 = vmatmul.bf16.gmra.mxu0 %v439
        %v1028 = vpop.f32.mrf.mxu0
        %v1029 = vadd.f32 %v980, %v1028
        %v1030 = vpop.f32.mrf.mxu0
        %v1031 = vadd.f32 %v982, %v1030
        %1032 = vmatmul.bf16.gmra.mxu0 %v442
        %v1033 = vpop.f32.mrf.mxu0
        %v1034 = vadd.f32 %v985, %v1033
        %v1035 = vpop.f32.mrf.mxu0
        %v1036 = vadd.f32 %v987, %v1035
        %1037 = vmatmul.bf16.gmra.mxu0 %v445
        %v1038 = vpop.f32.mrf.mxu0
        %v1039 = vadd.f32 %v990, %v1038
        %v1040 = vpop.f32.mrf.mxu0
        %v1041 = vadd.f32 %v992, %v1040
        %1042 = vmatmul.bf16.gmra.mxu0 %v448
        %v1043 = vpop.f32.mrf.mxu0
        %v1044 = vadd.f32 %v995, %v1043
        %v1045 = vpop.f32.mrf.mxu0
        %v1046 = vadd.f32 %v997, %v1045
        %1047 = vmatmul.bf16.gmra.mxu0 %v451
        %v1048 = vpop.f32.mrf.mxu0
        %v1049 = vadd.f32 %v1000, %v1048
        %v1050 = vpop.f32.mrf.mxu0
        %v1051 = vadd.f32 %v1002, %v1050
        %1052 = vmatmul.bf16.gmra.mxu0 %v454
        %v1053 = vpop.f32.mrf.mxu0
        %v1054 = vadd.f32 %v1005, %v1053
        %v1055 = vpop.f32.mrf.mxu0
        %v1056 = vadd.f32 %v1007, %v1055
        %1057 = vdwg.mxu0
        %1058 = vmatpush.bf16.msra.mxu0 %v860
        %1059 = vmatpush.bf16.msra.mxu0 %v856
        %1060 = vmatpush.bf16.msra.mxu0 %v852
        %1061 = vmatpush.bf16.msra.mxu0 %v848
        %1062 = vmatpush.bf16.msra.mxu0 %v844
        %1063 = vmatpush.bf16.msra.mxu0 %v840
        %1064 = vmatpush.bf16.msra.mxu0 %v836
        %1065 = vmatpush.bf16.msra.mxu0 %v832
        %1066 = vmatmul.bf16.gmra.mxu0 %v434
        %v1067 = vpop.f32.mrf.mxu0
        %v1068 = vadd.f32 %v1019, %v1067
        %v1069 = vpop.f32.mrf.mxu0
        %v1070 = vadd.f32 %v1021, %v1069
        %1071 = vmatmul.bf16.gmra.mxu0 %v437
        %v1072 = vpop.f32.mrf.mxu0
        %v1073 = vadd.f32 %v1024, %v1072
        %v1074 = vpop.f32.mrf.mxu0
        %v1075 = vadd.f32 %v1026, %v1074
        %1076 = vmatmul.bf16.gmra.mxu0 %v440
        %v1077 = vpop.f32.mrf.mxu0
        %v1078 = vadd.f32 %v1029, %v1077
        %v1079 = vpop.f32.mrf.mxu0
        %v1080 = vadd.f32 %v1031, %v1079
        %1081 = vmatmul.bf16.gmra.mxu0 %v443
        %v1082 = vpop.f32.mrf.mxu0
        %v1083 = vadd.f32 %v1034, %v1082
        %v1084 = vpop.f32.mrf.mxu0
        %v1085 = vadd.f32 %v1036, %v1084
        %1086 = vmatmul.bf16.gmra.mxu0 %v446
        %v1087 = vpop.f32.mrf.mxu0
        %v1088 = vadd.f32 %v1039, %v1087
        %v1089 = vpop.f32.mrf.mxu0
        %v1090 = vadd.f32 %v1041, %v1089
        %1091 = vmatmul.bf16.gmra.mxu0 %v449
        %v1092 = vpop.f32.mrf.mxu0
        %v1093 = vadd.f32 %v1044, %v1092
        %v1094 = vpop.f32.mrf.mxu0
        %v1095 = vadd.f32 %v1046, %v1094
        %1096 = vmatmul.bf16.gmra.mxu0 %v452
        %v1097 = vpop.f32.mrf.mxu0
        %v1098 = vadd.f32 %v1049, %v1097
        %v1099 = vpop.f32.mrf.mxu0
        %v1100 = vadd.f32 %v1051, %v1099
        %1101 = vmatmul.bf16.gmra.mxu0 %v455
        %v1102 = vpop.f32.mrf.mxu0
        %v1103 = vadd.f32 %v1054, %v1102
        %v1104 = vpop.f32.mrf.mxu0
        %v1105 = vadd.f32 %v1056, %v1104
        %1106 = vdwg.mxu0
        %1107 = vmatpush.bf16.msra.mxu0 %v797
        %1108 = vmatpush.bf16.msra.mxu0 %v793
        %1109 = vmatpush.bf16.msra.mxu0 %v789
        %1110 = vmatpush.bf16.msra.mxu0 %v785
        %1111 = vmatpush.bf16.msra.mxu0 %v781
        %1112 = vmatpush.bf16.msra.mxu0 %v777
        %1113 = vmatpush.bf16.msra.mxu0 %v773
        %1114 = vmatpush.bf16.msra.mxu0 %v769
        %1115 = vmatmul.bf16.gmra.mxu0 %v432
        %v1116 = vpop.f32.mrf.mxu0
        %v1117 = vadd.f32 0.0, %v1116
        %v1118 = vpop.f32.mrf.mxu0
        %v1119 = vadd.f32 0.0, %v1118
        %1120 = vmatmul.bf16.gmra.mxu0 %v435
        %v1121 = vpop.f32.mrf.mxu0
        %v1122 = vadd.f32 0.0, %v1121
        %v1123 = vpop.f32.mrf.mxu0
        %v1124 = vadd.f32 0.0, %v1123
        %1125 = vmatmul.bf16.gmra.mxu0 %v438
        %v1126 = vpop.f32.mrf.mxu0
        %v1127 = vadd.f32 0.0, %v1126
        %v1128 = vpop.f32.mrf.mxu0
        %v1129 = vadd.f32 0.0, %v1128
        %1130 = vmatmul.bf16.gmra.mxu0 %v441
        %v1131 = vpop.f32.mrf.mxu0
        %v1132 = vadd.f32 0.0, %v1131
        %v1133 = vpop.f32.mrf.mxu0
        %v1134 = vadd.f32 0.0, %v1133
        %1135 = vmatmul.bf16.gmra.mxu0 %v444
        %v1136 = vpop.f32.mrf.mxu0
        %v1137 = vadd.f32 0.0, %v1136
        %v1138 = vpop.f32.mrf.mxu0
        %v1139 = vadd.f32 0.0, %v1138
        %1140 = vmatmul.bf16.gmra.mxu0 %v447
        %v1141 = vpop.f32.mrf.mxu0
        %v1142 = vadd.f32 0.0, %v1141
        %v1143 = vpop.f32.mrf.mxu0
        %v1144 = vadd.f32 0.0, %v1143
        %1145 = vmatmul.bf16.gmra.mxu0 %v450
        %v1146 = vpop.f32.mrf.mxu0
        %v1147 = vadd.f32 0.0, %v1146
        %v1148 = vpop.f32.mrf.mxu0
        %v1149 = vadd.f32 0.0, %v1148
        %1150 = vmatmul.bf16.gmra.mxu0 %v453
        %v1151 = vpop.f32.mrf.mxu0
        %v1152 = vadd.f32 0.0, %v1151
        %v1153 = vpop.f32.mrf.mxu0
        %v1154 = vadd.f32 0.0, %v1153
        %1155 = vdwg.mxu0
        %1156 = vmatpush.bf16.msra.mxu0 %v829
        %1157 = vmatpush.bf16.msra.mxu0 %v825
        %1158 = vmatpush.bf16.msra.mxu0 %v821
        %1159 = vmatpush.bf16.msra.mxu0 %v817
        %1160 = vmatpush.bf16.msra.mxu0 %v813
        %1161 = vmatpush.bf16.msra.mxu0 %v809
        %1162 = vmatpush.bf16.msra.mxu0 %v805
        %1163 = vmatpush.bf16.msra.mxu0 %v801
        %1164 = vmatmul.bf16.gmra.mxu0 %v433
        %v1165 = vpop.f32.mrf.mxu0
        %v1166 = vadd.f32 %v1117, %v1165
        %v1167 = vpop.f32.mrf.mxu0
        %v1168 = vadd.f32 %v1119, %v1167
        %1169 = vmatmul.bf16.gmra.mxu0 %v436
        %v1170 = vpop.f32.mrf.mxu0
        %v1171 = vadd.f32 %v1122, %v1170
        %v1172 = vpop.f32.mrf.mxu0
        %v1173 = vadd.f32 %v1124, %v1172
        %1174 = vmatmul.bf16.gmra.mxu0 %v439
        %v1175 = vpop.f32.mrf.mxu0
        %v1176 = vadd.f32 %v1127, %v1175
        %v1177 = vpop.f32.mrf.mxu0
        %v1178 = vadd.f32 %v1129, %v1177
        %1179 = vmatmul.bf16.gmra.mxu0 %v442
        %v1180 = vpop.f32.mrf.mxu0
        %v1181 = vadd.f32 %v1132, %v1180
        %v1182 = vpop.f32.mrf.mxu0
        %v1183 = vadd.f32 %v1134, %v1182
        %1184 = vmatmul.bf16.gmra.mxu0 %v445
        %v1185 = vpop.f32.mrf.mxu0
        %v1186 = vadd.f32 %v1137, %v1185
        %v1187 = vpop.f32.mrf.mxu0
        %v1188 = vadd.f32 %v1139, %v1187
        %1189 = vmatmul.bf16.gmra.mxu0 %v448
        %v1190 = vpop.f32.mrf.mxu0
        %v1191 = vadd.f32 %v1142, %v1190
        %v1192 = vpop.f32.mrf.mxu0
        %v1193 = vadd.f32 %v1144, %v1192
        %1194 = vmatmul.bf16.gmra.mxu0 %v451
        %v1195 = vpop.f32.mrf.mxu0
        %v1196 = vadd.f32 %v1147, %v1195
        %v1197 = vpop.f32.mrf.mxu0
        %v1198 = vadd.f32 %v1149, %v1197
        %1199 = vmatmul.bf16.gmra.mxu0 %v454
        %v1200 = vpop.f32.mrf.mxu0
        %v1201 = vadd.f32 %v1152, %v1200
        %v1202 = vpop.f32.mrf.mxu0
        %v1203 = vadd.f32 %v1154, %v1202
        %1204 = vdwg.mxu0
        %1205 = vmatpush.bf16.msra.mxu0 %v861
        %1206 = vmatpush.bf16.msra.mxu0 %v857
        %1207 = vmatpush.bf16.msra.mxu0 %v853
        %1208 = vmatpush.bf16.msra.mxu0 %v849
        %1209 = vmatpush.bf16.msra.mxu0 %v845
        %1210 = vmatpush.bf16.msra.mxu0 %v841
        %1211 = vmatpush.bf16.msra.mxu0 %v837
        %1212 = vmatpush.bf16.msra.mxu0 %v833
        %1213 = vmatmul.bf16.gmra.mxu0 %v434
        %v1214 = vpop.f32.mrf.mxu0
        %v1215 = vadd.f32 %v1166, %v1214
        %v1216 = vpop.f32.mrf.mxu0
        %v1217 = vadd.f32 %v1168, %v1216
        %1218 = vmatmul.bf16.gmra.mxu0 %v437
        %v1219 = vpop.f32.mrf.mxu0
        %v1220 = vadd.f32 %v1171, %v1219
        %v1221 = vpop.f32.mrf.mxu0
        %v1222 = vadd.f32 %v1173, %v1221
        %1223 = vmatmul.bf16.gmra.mxu0 %v440
        %v1224 = vpop.f32.mrf.mxu0
        %v1225 = vadd.f32 %v1176, %v1224
        %v1226 = vpop.f32.mrf.mxu0
        %v1227 = vadd.f32 %v1178, %v1226
        %1228 = vmatmul.bf16.gmra.mxu0 %v443
        %v1229 = vpop.f32.mrf.mxu0
        %v1230 = vadd.f32 %v1181, %v1229
        %v1231 = vpop.f32.mrf.mxu0
        %v1232 = vadd.f32 %v1183, %v1231
        %1233 = vmatmul.bf16.gmra.mxu0 %v446
        %v1234 = vpop.f32.mrf.mxu0
        %v1235 = vadd.f32 %v1186, %v1234
        %v1236 = vpop.f32.mrf.mxu0
        %v1237 = vadd.f32 %v1188, %v1236
        %1238 = vmatmul.bf16.gmra.mxu0 %v449
        %v1239 = vpop.f32.mrf.mxu0
        %v1240 = vadd.f32 %v1191, %v1239
        %v1241 = vpop.f32.mrf.mxu0
        %v1242 = vadd.f32 %v1193, %v1241
        %1243 = vmatmul.bf16.gmra.mxu0 %v452
        %v1244 = vpop.f32.mrf.mxu0
        %v1245 = vadd.f32 %v1196, %v1244
        %v1246 = vpop.f32.mrf.mxu0
        %v1247 = vadd.f32 %v1198, %v1246
        %1248 = vmatmul.bf16.gmra.mxu0 %v455
        %v1249 = vpop.f32.mrf.mxu0
        %v1250 = vadd.f32 %v1201, %v1249
        %v1251 = vpop.f32.mrf.mxu0
        %v1252 = vadd.f32 %v1203, %v1251
        %1253 = vdwg.mxu0
        %1254 = vmatpush.bf16.msra.mxu0 %v798
        %1255 = vmatpush.bf16.msra.mxu0 %v794
        %1256 = vmatpush.bf16.msra.mxu0 %v790
        %1257 = vmatpush.bf16.msra.mxu0 %v786
        %1258 = vmatpush.bf16.msra.mxu0 %v782
        %1259 = vmatpush.bf16.msra.mxu0 %v778
        %1260 = vmatpush.bf16.msra.mxu0 %v774
        %1261 = vmatpush.bf16.msra.mxu0 %v770
        %1262 = vmatmul.bf16.gmra.mxu0 %v432
        %v1263 = vpop.f32.mrf.mxu0
        %v1264 = vadd.f32 0.0, %v1263
        %v1265 = vpop.f32.mrf.mxu0
        %v1266 = vadd.f32 0.0, %v1265
        %1267 = vmatmul.bf16.gmra.mxu0 %v435
        %v1268 = vpop.f32.mrf.mxu0
        %v1269 = vadd.f32 0.0, %v1268
        %v1270 = vpop.f32.mrf.mxu0
        %v1271 = vadd.f32 0.0, %v1270
        %1272 = vmatmul.bf16.gmra.mxu0 %v438
        %v1273 = vpop.f32.mrf.mxu0
        %v1274 = vadd.f32 0.0, %v1273
        %v1275 = vpop.f32.mrf.mxu0
        %v1276 = vadd.f32 0.0, %v1275
        %1277 = vmatmul.bf16.gmra.mxu0 %v441
        %v1278 = vpop.f32.mrf.mxu0
        %v1279 = vadd.f32 0.0, %v1278
        %v1280 = vpop.f32.mrf.mxu0
        %v1281 = vadd.f32 0.0, %v1280
        %1282 = vmatmul.bf16.gmra.mxu0 %v444
        %v1283 = vpop.f32.mrf.mxu0
        %v1284 = vadd.f32 0.0, %v1283
        %v1285 = vpop.f32.mrf.mxu0
        %v1286 = vadd.f32 0.0, %v1285
        %1287 = vmatmul.bf16.gmra.mxu0 %v447
        %v1288 = vpop.f32.mrf.mxu0
        %v1289 = vadd.f32 0.0, %v1288
        %v1290 = vpop.f32.mrf.mxu0
        %v1291 = vadd.f32 0.0, %v1290
        %1292 = vmatmul.bf16.gmra.mxu0 %v450
        %v1293 = vpop.f32.mrf.mxu0
        %v1294 = vadd.f32 0.0, %v1293
        %v1295 = vpop.f32.mrf.mxu0
        %v1296 = vadd.f32 0.0, %v1295
        %1297 = vmatmul.bf16.gmra.mxu0 %v453
        %v1298 = vpop.f32.mrf.mxu0
        %v1299 = vadd.f32 0.0, %v1298
        %v1300 = vpop.f32.mrf.mxu0
        %v1301 = vadd.f32 0.0, %v1300
        %1302 = vdwg.mxu0
        %1303 = vmatpush.bf16.msra.mxu0 %v830
        %1304 = vmatpush.bf16.msra.mxu0 %v826
        %1305 = vmatpush.bf16.msra.mxu0 %v822
        %1306 = vmatpush.bf16.msra.mxu0 %v818
        %1307 = vmatpush.bf16.msra.mxu0 %v814
        %1308 = vmatpush.bf16.msra.mxu0 %v810
        %1309 = vmatpush.bf16.msra.mxu0 %v806
        %1310 = vmatpush.bf16.msra.mxu0 %v802
        %1311 = vmatmul.bf16.gmra.mxu0 %v433
        %v1312 = vpop.f32.mrf.mxu0
        %v1313 = vadd.f32 %v1264, %v1312
        %v1314 = vpop.f32.mrf.mxu0
        %v1315 = vadd.f32 %v1266, %v1314
        %1316 = vmatmul.bf16.gmra.mxu0 %v436
        %v1317 = vpop.f32.mrf.mxu0
        %v1318 = vadd.f32 %v1269, %v1317
        %v1319 = vpop.f32.mrf.mxu0
        %v1320 = vadd.f32 %v1271, %v1319
        %1321 = vmatmul.bf16.gmra.mxu0 %v439
        %v1322 = vpop.f32.mrf.mxu0
        %v1323 = vadd.f32 %v1274, %v1322
        %v1324 = vpop.f32.mrf.mxu0
        %v1325 = vadd.f32 %v1276, %v1324
        %1326 = vmatmul.bf16.gmra.mxu0 %v442
        %v1327 = vpop.f32.mrf.mxu0
        %v1328 = vadd.f32 %v1279, %v1327
        %v1329 = vpop.f32.mrf.mxu0
        %v1330 = vadd.f32 %v1281, %v1329
        %1331 = vmatmul.bf16.gmra.mxu0 %v445
        %v1332 = vpop.f32.mrf.mxu0
        %v1333 = vadd.f32 %v1284, %v1332
        %v1334 = vpop.f32.mrf.mxu0
        %v1335 = vadd.f32 %v1286, %v1334
        %1336 = vmatmul.bf16.gmra.mxu0 %v448
        %v1337 = vpop.f32.mrf.mxu0
        %v1338 = vadd.f32 %v1289, %v1337
        %v1339 = vpop.f32.mrf.mxu0
        %v1340 = vadd.f32 %v1291, %v1339
        %1341 = vmatmul.bf16.gmra.mxu0 %v451
        %v1342 = vpop.f32.mrf.mxu0
        %v1343 = vadd.f32 %v1294, %v1342
        %v1344 = vpop.f32.mrf.mxu0
        %v1345 = vadd.f32 %v1296, %v1344
        %1346 = vmatmul.bf16.gmra.mxu0 %v454
        %v1347 = vpop.f32.mrf.mxu0
        %v1348 = vadd.f32 %v1299, %v1347
        %v1349 = vpop.f32.mrf.mxu0
        %v1350 = vadd.f32 %v1301, %v1349
        %1351 = vdwg.mxu0
        %1352 = vmatpush.bf16.msra.mxu0 %v862
        %1353 = vmatpush.bf16.msra.mxu0 %v858
        %1354 = vmatpush.bf16.msra.mxu0 %v854
        %1355 = vmatpush.bf16.msra.mxu0 %v850
        %1356 = vmatpush.bf16.msra.mxu0 %v846
        %1357 = vmatpush.bf16.msra.mxu0 %v842
        %1358 = vmatpush.bf16.msra.mxu0 %v838
        %1359 = vmatpush.bf16.msra.mxu0 %v834
        %1360 = vmatmul.bf16.gmra.mxu0 %v434
        %v1361 = vpop.f32.mrf.mxu0
        %v1362 = vadd.f32 %v1313, %v1361
        %v1363 = vpop.f32.mrf.mxu0
        %v1364 = vadd.f32 %v1315, %v1363
        %1365 = vmatmul.bf16.gmra.mxu0 %v437
        %v1366 = vpop.f32.mrf.mxu0
        %v1367 = vadd.f32 %v1318, %v1366
        %v1368 = vpop.f32.mrf.mxu0
        %v1369 = vadd.f32 %v1320, %v1368
        %1370 = vmatmul.bf16.gmra.mxu0 %v440
        %v1371 = vpop.f32.mrf.mxu0
        %v1372 = vadd.f32 %v1323, %v1371
        %v1373 = vpop.f32.mrf.mxu0
        %v1374 = vadd.f32 %v1325, %v1373
        %1375 = vmatmul.bf16.gmra.mxu0 %v443
        %v1376 = vpop.f32.mrf.mxu0
        %v1377 = vadd.f32 %v1328, %v1376
        %v1378 = vpop.f32.mrf.mxu0
        %v1379 = vadd.f32 %v1330, %v1378
        %1380 = vmatmul.bf16.gmra.mxu0 %v446
        %v1381 = vpop.f32.mrf.mxu0
        %v1382 = vadd.f32 %v1333, %v1381
        %v1383 = vpop.f32.mrf.mxu0
        %v1384 = vadd.f32 %v1335, %v1383
        %1385 = vmatmul.bf16.gmra.mxu0 %v449
        %v1386 = vpop.f32.mrf.mxu0
        %v1387 = vadd.f32 %v1338, %v1386
        %v1388 = vpop.f32.mrf.mxu0
        %v1389 = vadd.f32 %v1340, %v1388
        %1390 = vmatmul.bf16.gmra.mxu0 %v452
        %v1391 = vpop.f32.mrf.mxu0
        %v1392 = vadd.f32 %v1343, %v1391
        %v1393 = vpop.f32.mrf.mxu0
        %v1394 = vadd.f32 %v1345, %v1393
        %1395 = vmatmul.bf16.gmra.mxu0 %v455
        %v1396 = vpop.f32.mrf.mxu0
        %v1397 = vadd.f32 %v1348, %v1396
        %v1398 = vpop.f32.mrf.mxu0
        %v1399 = vadd.f32 %v1350, %v1398
        %1400 = vdwg.mxu0
        %1401 = vmatpush.bf16.msra.mxu0 %v799
        %1402 = vmatpush.bf16.msra.mxu0 %v795
        %1403 = vmatpush.bf16.msra.mxu0 %v791
        %1404 = vmatpush.bf16.msra.mxu0 %v787
        %1405 = vmatpush.bf16.msra.mxu0 %v783
        %1406 = vmatpush.bf16.msra.mxu0 %v779
        %1407 = vmatpush.bf16.msra.mxu0 %v775
        %1408 = vmatpush.bf16.msra.mxu0 %v771
        %1409 = vmatmul.bf16.gmra.mxu0 %v432
        %v1410 = vpop.f32.mrf.mxu0
        %v1411 = vadd.f32 0.0, %v1410
        %v1412 = vpop.f32.mrf.mxu0
        %v1413 = vadd.f32 0.0, %v1412
        %1414 = vmatmul.bf16.gmra.mxu0 %v435
        %v1415 = vpop.f32.mrf.mxu0
        %v1416 = vadd.f32 0.0, %v1415
        %v1417 = vpop.f32.mrf.mxu0
        %v1418 = vadd.f32 0.0, %v1417
        %1419 = vmatmul.bf16.gmra.mxu0 %v438
        %v1420 = vpop.f32.mrf.mxu0
        %v1421 = vadd.f32 0.0, %v1420
        %v1422 = vpop.f32.mrf.mxu0
        %v1423 = vadd.f32 0.0, %v1422
        %1424 = vmatmul.bf16.gmra.mxu0 %v441
        %v1425 = vpop.f32.mrf.mxu0
        %v1426 = vadd.f32 0.0, %v1425
        %v1427 = vpop.f32.mrf.mxu0
        %v1428 = vadd.f32 0.0, %v1427
        %1429 = vmatmul.bf16.gmra.mxu0 %v444
        %v1430 = vpop.f32.mrf.mxu0
        %v1431 = vadd.f32 0.0, %v1430
        %v1432 = vpop.f32.mrf.mxu0
        %v1433 = vadd.f32 0.0, %v1432
        %1434 = vmatmul.bf16.gmra.mxu0 %v447
        %v1435 = vpop.f32.mrf.mxu0
        %v1436 = vadd.f32 0.0, %v1435
        %v1437 = vpop.f32.mrf.mxu0
        %v1438 = vadd.f32 0.0, %v1437
        %1439 = vmatmul.bf16.gmra.mxu0 %v450
        %v1440 = vpop.f32.mrf.mxu0
        %v1441 = vadd.f32 0.0, %v1440
        %v1442 = vpop.f32.mrf.mxu0
        %v1443 = vadd.f32 0.0, %v1442
        %1444 = vmatmul.bf16.gmra.mxu0 %v453
        %v1445 = vpop.f32.mrf.mxu0
        %v1446 = vadd.f32 0.0, %v1445
        %v1447 = vpop.f32.mrf.mxu0
        %v1448 = vadd.f32 0.0, %v1447
        %1449 = vdwg.mxu0
        %1450 = vmatpush.bf16.msra.mxu0 %v831
        %1451 = vmatpush.bf16.msra.mxu0 %v827
        %1452 = vmatpush.bf16.msra.mxu0 %v823
        %1453 = vmatpush.bf16.msra.mxu0 %v819
        %1454 = vmatpush.bf16.msra.mxu0 %v815
        %1455 = vmatpush.bf16.msra.mxu0 %v811
        %1456 = vmatpush.bf16.msra.mxu0 %v807
        %1457 = vmatpush.bf16.msra.mxu0 %v803
        %1458 = vmatmul.bf16.gmra.mxu0 %v433
        %v1459 = vpop.f32.mrf.mxu0
        %v1460 = vadd.f32 %v1411, %v1459
        %v1461 = vpop.f32.mrf.mxu0
        %v1462 = vadd.f32 %v1413, %v1461
        %1463 = vmatmul.bf16.gmra.mxu0 %v436
        %v1464 = vpop.f32.mrf.mxu0
        %v1465 = vadd.f32 %v1416, %v1464
        %v1466 = vpop.f32.mrf.mxu0
        %v1467 = vadd.f32 %v1418, %v1466
        %1468 = vmatmul.bf16.gmra.mxu0 %v439
        %v1469 = vpop.f32.mrf.mxu0
        %v1470 = vadd.f32 %v1421, %v1469
        %v1471 = vpop.f32.mrf.mxu0
        %v1472 = vadd.f32 %v1423, %v1471
        %1473 = vmatmul.bf16.gmra.mxu0 %v442
        %v1474 = vpop.f32.mrf.mxu0
        %v1475 = vadd.f32 %v1426, %v1474
        %v1476 = vpop.f32.mrf.mxu0
        %v1477 = vadd.f32 %v1428, %v1476
        %1478 = vmatmul.bf16.gmra.mxu0 %v445
        %v1479 = vpop.f32.mrf.mxu0
        %v1480 = vadd.f32 %v1431, %v1479
        %v1481 = vpop.f32.mrf.mxu0
        %v1482 = vadd.f32 %v1433, %v1481
        %1483 = vmatmul.bf16.gmra.mxu0 %v448
        %v1484 = vpop.f32.mrf.mxu0
        %v1485 = vadd.f32 %v1436, %v1484
        %v1486 = vpop.f32.mrf.mxu0
        %v1487 = vadd.f32 %v1438, %v1486
        %1488 = vmatmul.bf16.gmra.mxu0 %v451
        %v1489 = vpop.f32.mrf.mxu0
        %v1490 = vadd.f32 %v1441, %v1489
        %v1491 = vpop.f32.mrf.mxu0
        %v1492 = vadd.f32 %v1443, %v1491
        %1493 = vmatmul.bf16.gmra.mxu0 %v454
        %v1494 = vpop.f32.mrf.mxu0
        %v1495 = vadd.f32 %v1446, %v1494
        %v1496 = vpop.f32.mrf.mxu0
        %v1497 = vadd.f32 %v1448, %v1496
        %1498 = vdwg.mxu0
        %1499 = vmatpush.bf16.msra.mxu0 %v863
        %1500 = vmatpush.bf16.msra.mxu0 %v859
        %1501 = vmatpush.bf16.msra.mxu0 %v855
        %1502 = vmatpush.bf16.msra.mxu0 %v851
        %1503 = vmatpush.bf16.msra.mxu0 %v847
        %1504 = vmatpush.bf16.msra.mxu0 %v843
        %1505 = vmatpush.bf16.msra.mxu0 %v839
        %1506 = vmatpush.bf16.msra.mxu0 %v835
        %1507 = vmatmul.bf16.gmra.mxu0 %v434
        %v1508 = vpop.f32.mrf.mxu0
        %v1509 = vadd.f32 %v1460, %v1508
        %v1510 = vpop.f32.mrf.mxu0
        %v1511 = vadd.f32 %v1462, %v1510
        %1512 = vmatmul.bf16.gmra.mxu0 %v437
        %v1513 = vpop.f32.mrf.mxu0
        %v1514 = vadd.f32 %v1465, %v1513
        %v1515 = vpop.f32.mrf.mxu0
        %v1516 = vadd.f32 %v1467, %v1515
        %1517 = vmatmul.bf16.gmra.mxu0 %v440
        %v1518 = vpop.f32.mrf.mxu0
        %v1519 = vadd.f32 %v1470, %v1518
        %v1520 = vpop.f32.mrf.mxu0
        %v1521 = vadd.f32 %v1472, %v1520
        %1522 = vmatmul.bf16.gmra.mxu0 %v443
        %v1523 = vpop.f32.mrf.mxu0
        %v1524 = vadd.f32 %v1475, %v1523
        %v1525 = vpop.f32.mrf.mxu0
        %v1526 = vadd.f32 %v1477, %v1525
        %1527 = vmatmul.bf16.gmra.mxu0 %v446
        %v1528 = vpop.f32.mrf.mxu0
        %v1529 = vadd.f32 %v1480, %v1528
        %v1530 = vpop.f32.mrf.mxu0
        %v1531 = vadd.f32 %v1482, %v1530
        %1532 = vmatmul.bf16.gmra.mxu0 %v449
        %v1533 = vpop.f32.mrf.mxu0
        %v1534 = vadd.f32 %v1485, %v1533
        %v1535 = vpop.f32.mrf.mxu0
        %v1536 = vadd.f32 %v1487, %v1535
        %1537 = vmatmul.bf16.gmra.mxu0 %v452
        %v1538 = vpop.f32.mrf.mxu0
        %v1539 = vadd.f32 %v1490, %v1538
        %v1540 = vpop.f32.mrf.mxu0
        %v1541 = vadd.f32 %v1492, %v1540
        %1542 = vmatmul.bf16.gmra.mxu0 %v455
        %v1543 = vpop.f32.mrf.mxu0
        %v1544 = vadd.f32 %v1495, %v1543
        %v1545 = vpop.f32.mrf.mxu0
        %v1546 = vadd.f32 %v1497, %v1545
        %1547 = vdwg.mxu0
        %1548 = vst [vmem:[#allocation2] sm:$0xff] %v1068
        %1549 = vst [vmem:[#allocation2 + $0x8] sm:$0xff] %v1215
        %1550 = vst [vmem:[#allocation2 + $0x10] sm:$0xff] %v1362
        %1551 = vst [vmem:[#allocation2 + $0x18] sm:$0xff] %v1509
        %1552 = vst [vmem:[#allocation2 + $0x20] sm:$0xff] %v1070
        %1553 = vst [vmem:[#allocation2 + $0x28] sm:$0xff] %v1217
        %1554 = vst [vmem:[#allocation2 + $0x30] sm:$0xff] %v1364
        %1555 = vst [vmem:[#allocation2 + $0x38] sm:$0xff] %v1511
        %1556 = vst [vmem:[#allocation2 + $0x40] sm:$0xff] %v1073
        %1557 = vst [vmem:[#allocation2 + $0x48] sm:$0xff] %v1220
        %1558 = vst [vmem:[#allocation2 + $0x50] sm:$0xff] %v1367
        %1559 = vst [vmem:[#allocation2 + $0x58] sm:$0xff] %v1514
        %1560 = vst [vmem:[#allocation2 + $0x60] sm:$0xff] %v1075
        %1561 = vst [vmem:[#allocation2 + $0x68] sm:$0xff] %v1222
        %1562 = vst [vmem:[#allocation2 + $0x70] sm:$0xff] %v1369
        %1563 = vst [vmem:[#allocation2 + $0x78] sm:$0xff] %v1516
        %1564 = vst [vmem:[#allocation2 + $0x80] sm:$0xff] %v1078
        %1565 = vst [vmem:[#allocation2 + $0x88] sm:$0xff] %v1225
        %1566 = vst [vmem:[#allocation2 + $0x90] sm:$0xff] %v1372
        %1567 = vst [vmem:[#allocation2 + $0x98] sm:$0xff] %v1519
        %1568 = vst [vmem:[#allocation2 + $0xa0] sm:$0xff] %v1080
        %1569 = vst [vmem:[#allocation2 + $0xa8] sm:$0xff] %v1227
        %1570 = vst [vmem:[#allocation2 + $0xb0] sm:$0xff] %v1374
        %1571 = vst [vmem:[#allocation2 + $0xb8] sm:$0xff] %v1521
        %1572 = vst [vmem:[#allocation2 + $0xc0] sm:$0xff] %v1083
        %1573 = vst [vmem:[#allocation2 + $0xc8] sm:$0xff] %v1230
        %1574 = vst [vmem:[#allocation2 + $0xd0] sm:$0xff] %v1377
        %1575 = vst [vmem:[#allocation2 + $0xd8] sm:$0xff] %v1524
        %1576 = vst [vmem:[#allocation2 + $0xe0] sm:$0xff] %v1085
        %1577 = vst [vmem:[#allocation2 + $0xe8] sm:$0xff] %v1232
        %1578 = vst [vmem:[#allocation2 + $0xf0] sm:$0xff] %v1379
        %1579 = vst [vmem:[#allocation2 + $0xf8] sm:$0xff] %v1526
        %1580 = vst [vmem:[#allocation2 + $0x100] sm:$0xff] %v1088
        %1581 = vst [vmem:[#allocation2 + $0x108] sm:$0xff] %v1235
        %1582 = vst [vmem:[#allocation2 + $0x110] sm:$0xff] %v1382
        %1583 = vst [vmem:[#allocation2 + $0x118] sm:$0xff] %v1529
        %1584 = vst [vmem:[#allocation2 + $0x120] sm:$0xff] %v1090
        %1585 = vst [vmem:[#allocation2 + $0x128] sm:$0xff] %v1237
        %1586 = vst [vmem:[#allocation2 + $0x130] sm:$0xff] %v1384
        %1587 = vst [vmem:[#allocation2 + $0x138] sm:$0xff] %v1531
        %1588 = vst [vmem:[#allocation2 + $0x140] sm:$0xff] %v1093
        %1589 = vst [vmem:[#allocation2 + $0x148] sm:$0xff] %v1240
        %1590 = vst [vmem:[#allocation2 + $0x150] sm:$0xff] %v1387
        %1591 = vst [vmem:[#allocation2 + $0x158] sm:$0xff] %v1534
        %1592 = vst [vmem:[#allocation2 + $0x160] sm:$0xff] %v1095
        %1593 = vst [vmem:[#allocation2 + $0x168] sm:$0xff] %v1242
        %1594 = vst [vmem:[#allocation2 + $0x170] sm:$0xff] %v1389
        %1595 = vst [vmem:[#allocation2 + $0x178] sm:$0xff] %v1536
        %1596 = vst [vmem:[#allocation2 + $0x180] sm:$0xff] %v1098
        %1597 = vst [vmem:[#allocation2 + $0x188] sm:$0xff] %v1245
        %1598 = vst [vmem:[#allocation2 + $0x190] sm:$0xff] %v1392
        %1599 = vst [vmem:[#allocation2 + $0x198] sm:$0xff] %v1539
        %1600 = vst [vmem:[#allocation2 + $0x1a0] sm:$0xff] %v1100
        %1601 = vst [vmem:[#allocation2 + $0x1a8] sm:$0xff] %v1247
        %1602 = vst [vmem:[#allocation2 + $0x1b0] sm:$0xff] %v1394
        %1603 = vst [vmem:[#allocation2 + $0x1b8] sm:$0xff] %v1541
        %1604 = vst [vmem:[#allocation2 + $0x1c0] sm:$0xff] %v1103
        %1605 = vst [vmem:[#allocation2 + $0x1c8] sm:$0xff] %v1250
        %1606 = vst [vmem:[#allocation2 + $0x1d0] sm:$0xff] %v1397
        %1607 = vst [vmem:[#allocation2 + $0x1d8] sm:$0xff] %v1544
        %1608 = vst [vmem:[#allocation2 + $0x1e0] sm:$0xff] %v1105
        %1609 = vst [vmem:[#allocation2 + $0x1e8] sm:$0xff] %v1252
        %1610 = vst [vmem:[#allocation2 + $0x1f0] sm:$0xff] %v1399
        %1611 = vst [vmem:[#allocation2 + $0x1f8] sm:$0xff] %v1546
        %v1612 = vld [vmem:[#allocation6] sm:$0xff]
        %v1613 = vld [vmem:[#allocation6 + $0x8] sm:$0xff]
        %v1614 = vld [vmem:[#allocation6 + $0x10] sm:$0xff]
        %v1615 = vld [vmem:[#allocation6 + $0x18] sm:$0xff]
        %v1616 = vld [vmem:[#allocation6 + $0x20] sm:$0xff]
        %v1617 = vld [vmem:[#allocation6 + $0x28] sm:$0xff]
        %v1618 = vld [vmem:[#allocation6 + $0x30] sm:$0xff]
        %v1619 = vld [vmem:[#allocation6 + $0x38] sm:$0xff]
        %v1620 = vld [vmem:[#allocation6 + $0x40] sm:$0xff]
        %v1621 = vld [vmem:[#allocation6 + $0x48] sm:$0xff]
        %v1622 = vld [vmem:[#allocation6 + $0x50] sm:$0xff]
        %v1623 = vld [vmem:[#allocation6 + $0x58] sm:$0xff]
        %v1624 = vld [vmem:[#allocation6 + $0x60] sm:$0xff]
        %v1625 = vld [vmem:[#allocation6 + $0x68] sm:$0xff]
        %v1626 = vld [vmem:[#allocation6 + $0x70] sm:$0xff]
        %v1627 = vld [vmem:[#allocation6 + $0x78] sm:$0xff]
        %v1628 = vld [vmem:[#allocation2] sm:$0xff]
        %v1629 = vld [vmem:[#allocation2 + $0x8] sm:$0xff]
        %v1630 = vld [vmem:[#allocation2 + $0x10] sm:$0xff]
        %v1631 = vld [vmem:[#allocation2 + $0x18] sm:$0xff]
        %v1632 = vld [vmem:[#allocation2 + $0x20] sm:$0xff]
        %v1633 = vld [vmem:[#allocation2 + $0x28] sm:$0xff]
        %v1634 = vld [vmem:[#allocation2 + $0x30] sm:$0xff]
        %v1635 = vld [vmem:[#allocation2 + $0x38] sm:$0xff]
        %v1636 = vld [vmem:[#allocation2 + $0x40] sm:$0xff]
        %v1637 = vld [vmem:[#allocation2 + $0x48] sm:$0xff]
        %v1638 = vld [vmem:[#allocation2 + $0x50] sm:$0xff]
        %v1639 = vld [vmem:[#allocation2 + $0x58] sm:$0xff]
        %v1640 = vld [vmem:[#allocation2 + $0x60] sm:$0xff]
        %v1641 = vld [vmem:[#allocation2 + $0x68] sm:$0xff]
        %v1642 = vld [vmem:[#allocation2 + $0x70] sm:$0xff]
        %v1643 = vld [vmem:[#allocation2 + $0x78] sm:$0xff]
        %v1644 = vld [vmem:[#allocation2 + $0x80] sm:$0xff]
        %v1645 = vld [vmem:[#allocation2 + $0x88] sm:$0xff]
        %v1646 = vld [vmem:[#allocation2 + $0x90] sm:$0xff]
        %v1647 = vld [vmem:[#allocation2 + $0x98] sm:$0xff]
        %v1648 = vld [vmem:[#allocation2 + $0xa0] sm:$0xff]
        %v1649 = vld [vmem:[#allocation2 + $0xa8] sm:$0xff]
        %v1650 = vld [vmem:[#allocation2 + $0xb0] sm:$0xff]
        %v1651 = vld [vmem:[#allocation2 + $0xb8] sm:$0xff]
        %v1652 = vld [vmem:[#allocation2 + $0xc0] sm:$0xff]
        %v1653 = vld [vmem:[#allocation2 + $0xc8] sm:$0xff]
        %v1654 = vld [vmem:[#allocation2 + $0xd0] sm:$0xff]
        %v1655 = vld [vmem:[#allocation2 + $0xd8] sm:$0xff]
        %v1656 = vld [vmem:[#allocation2 + $0xe0] sm:$0xff]
        %v1657 = vld [vmem:[#allocation2 + $0xe8] sm:$0xff]
        %v1658 = vld [vmem:[#allocation2 + $0xf0] sm:$0xff]
        %v1659 = vld [vmem:[#allocation2 + $0xf8] sm:$0xff]
        %v1660 = vld [vmem:[#allocation2 + $0x100] sm:$0xff]
        %v1661 = vld [vmem:[#allocation2 + $0x108] sm:$0xff]
        %v1662 = vld [vmem:[#allocation2 + $0x110] sm:$0xff]
        %v1663 = vld [vmem:[#allocation2 + $0x118] sm:$0xff]
        %v1664 = vld [vmem:[#allocation2 + $0x120] sm:$0xff]
        %v1665 = vld [vmem:[#allocation2 + $0x128] sm:$0xff]
        %v1666 = vld [vmem:[#allocation2 + $0x130] sm:$0xff]
        %v1667 = vld [vmem:[#allocation2 + $0x138] sm:$0xff]
        %v1668 = vld [vmem:[#allocation2 + $0x140] sm:$0xff]
        %v1669 = vld [vmem:[#allocation2 + $0x148] sm:$0xff]
        %v1670 = vld [vmem:[#allocation2 + $0x150] sm:$0xff]
        %v1671 = vld [vmem:[#allocation2 + $0x158] sm:$0xff]
        %v1672 = vld [vmem:[#allocation2 + $0x160] sm:$0xff]
        %v1673 = vld [vmem:[#allocation2 + $0x168] sm:$0xff]
        %v1674 = vld [vmem:[#allocation2 + $0x170] sm:$0xff]
        %v1675 = vld [vmem:[#allocation2 + $0x178] sm:$0xff]
        %v1676 = vld [vmem:[#allocation2 + $0x180] sm:$0xff]
        %v1677 = vld [vmem:[#allocation2 + $0x188] sm:$0xff]
        %v1678 = vld [vmem:[#allocation2 + $0x190] sm:$0xff]
        %v1679 = vld [vmem:[#allocation2 + $0x198] sm:$0xff]
        %v1680 = vld [vmem:[#allocation2 + $0x1a0] sm:$0xff]
        %v1681 = vld [vmem:[#allocation2 + $0x1a8] sm:$0xff]
        %v1682 = vld [vmem:[#allocation2 + $0x1b0] sm:$0xff]
        %v1683 = vld [vmem:[#allocation2 + $0x1b8] sm:$0xff]
        %v1684 = vld [vmem:[#allocation2 + $0x1c0] sm:$0xff]
        %v1685 = vld [vmem:[#allocation2 + $0x1c8] sm:$0xff]
        %v1686 = vld [vmem:[#allocation2 + $0x1d0] sm:$0xff]
        %v1687 = vld [vmem:[#allocation2 + $0x1d8] sm:$0xff]
        %v1688 = vld [vmem:[#allocation2 + $0x1e0] sm:$0xff]
        %v1689 = vld [vmem:[#allocation2 + $0x1e8] sm:$0xff]
        %v1690 = vld [vmem:[#allocation2 + $0x1f0] sm:$0xff]
        %v1691 = vld [vmem:[#allocation2 + $0x1f8] sm:$0xff]
        %1692 = vmatpush.msra.mxu0 %v1688
        %1693 = vmatpush.msra.mxu0 %v1684
        %1694 = vmatpush.msra.mxu0 %v1680
        %1695 = vmatpush.msra.mxu0 %v1676
        %1696 = vmatpush.msra.mxu0 %v1672
        %1697 = vmatpush.msra.mxu0 %v1668
        %1698 = vmatpush.msra.mxu0 %v1664
        %1699 = vmatpush.msra.mxu0 %v1660
        %1700 = vmatpush.msra.mxu0 %v1656
        %1701 = vmatpush.msra.mxu0 %v1652
        %1702 = vmatpush.msra.mxu0 %v1648
        %1703 = vmatpush.msra.mxu0 %v1644
        %1704 = vmatpush.msra.mxu0 %v1640
        %1705 = vmatpush.msra.mxu0 %v1636
        %1706 = vmatpush.msra.mxu0 %v1632
        %1707 = vmatpush.msra.mxu0 %v1628
        %1708 = vmatmul.f32.gmra.mxu0 %v1612
        %v1709 = vpop.f32.mrf.mxu0
        %v1710 = vadd.f32 0.0, %v1709
        %1711 = vmatmul.f32.gmra.mxu0 %v1613
        %v1712 = vpop.f32.mrf.mxu0
        %v1713 = vadd.f32 0.0, %v1712
        %1714 = vmatmul.f32.gmra.mxu0 %v1614
        %v1715 = vpop.f32.mrf.mxu0
        %v1716 = vadd.f32 0.0, %v1715
        %1717 = vmatmul.f32.gmra.mxu0 %v1615
        %v1718 = vpop.f32.mrf.mxu0
        %v1719 = vadd.f32 0.0, %v1718
        %1720 = vmatmul.f32.gmra.mxu0 %v1616
        %v1721 = vpop.f32.mrf.mxu0
        %v1722 = vadd.f32 0.0, %v1721
        %1723 = vmatmul.f32.gmra.mxu0 %v1617
        %v1724 = vpop.f32.mrf.mxu0
        %v1725 = vadd.f32 0.0, %v1724
        %1726 = vmatmul.f32.gmra.mxu0 %v1618
        %v1727 = vpop.f32.mrf.mxu0
        %v1728 = vadd.f32 0.0, %v1727
        %1729 = vmatmul.f32.gmra.mxu0 %v1619
        %v1730 = vpop.f32.mrf.mxu0
        %v1731 = vadd.f32 0.0, %v1730
        %1732 = vmatmul.f32.gmra.mxu0 %v1620
        %v1733 = vpop.f32.mrf.mxu0
        %v1734 = vadd.f32 0.0, %v1733
        %1735 = vmatmul.f32.gmra.mxu0 %v1621
        %v1736 = vpop.f32.mrf.mxu0
        %v1737 = vadd.f32 0.0, %v1736
        %1738 = vmatmul.f32.gmra.mxu0 %v1622
        %v1739 = vpop.f32.mrf.mxu0
        %v1740 = vadd.f32 0.0, %v1739
        %1741 = vmatmul.f32.gmra.mxu0 %v1623
        %v1742 = vpop.f32.mrf.mxu0
        %v1743 = vadd.f32 0.0, %v1742
        %1744 = vmatmul.f32.gmra.mxu0 %v1624
        %v1745 = vpop.f32.mrf.mxu0
        %v1746 = vadd.f32 0.0, %v1745
        %1747 = vmatmul.f32.gmra.mxu0 %v1625
        %v1748 = vpop.f32.mrf.mxu0
        %v1749 = vadd.f32 0.0, %v1748
        %1750 = vmatmul.f32.gmra.mxu0 %v1626
        %v1751 = vpop.f32.mrf.mxu0
        %v1752 = vadd.f32 0.0, %v1751
        %1753 = vmatmul.f32.gmra.mxu0 %v1627
        %v1754 = vpop.f32.mrf.mxu0
        %v1755 = vadd.f32 0.0, %v1754
        %1756 = vdwg.mxu0
        %1757 = vmatpush.msra.mxu0 %v1689
        %1758 = vmatpush.msra.mxu0 %v1685
        %1759 = vmatpush.msra.mxu0 %v1681
        %1760 = vmatpush.msra.mxu0 %v1677
        %1761 = vmatpush.msra.mxu0 %v1673
        %1762 = vmatpush.msra.mxu0 %v1669
        %1763 = vmatpush.msra.mxu0 %v1665
        %1764 = vmatpush.msra.mxu0 %v1661
        %1765 = vmatpush.msra.mxu0 %v1657
        %1766 = vmatpush.msra.mxu0 %v1653
        %1767 = vmatpush.msra.mxu0 %v1649
        %1768 = vmatpush.msra.mxu0 %v1645
        %1769 = vmatpush.msra.mxu0 %v1641
        %1770 = vmatpush.msra.mxu0 %v1637
        %1771 = vmatpush.msra.mxu0 %v1633
        %1772 = vmatpush.msra.mxu0 %v1629
        %1773 = vmatmul.f32.gmra.mxu0 %v1612
        %v1774 = vpop.f32.mrf.mxu0
        %v1775 = vadd.f32 0.0, %v1774
        %1776 = vmatmul.f32.gmra.mxu0 %v1613
        %v1777 = vpop.f32.mrf.mxu0
        %v1778 = vadd.f32 0.0, %v1777
        %1779 = vmatmul.f32.gmra.mxu0 %v1614
        %v1780 = vpop.f32.mrf.mxu0
        %v1781 = vadd.f32 0.0, %v1780
        %1782 = vmatmul.f32.gmra.mxu0 %v1615
        %v1783 = vpop.f32.mrf.mxu0
        %v1784 = vadd.f32 0.0, %v1783
        %1785 = vmatmul.f32.gmra.mxu0 %v1616
        %v1786 = vpop.f32.mrf.mxu0
        %v1787 = vadd.f32 0.0, %v1786
        %1788 = vmatmul.f32.gmra.mxu0 %v1617
        %v1789 = vpop.f32.mrf.mxu0
        %v1790 = vadd.f32 0.0, %v1789
        %1791 = vmatmul.f32.gmra.mxu0 %v1618
        %v1792 = vpop.f32.mrf.mxu0
        %v1793 = vadd.f32 0.0, %v1792
        %1794 = vmatmul.f32.gmra.mxu0 %v1619
        %v1795 = vpop.f32.mrf.mxu0
        %v1796 = vadd.f32 0.0, %v1795
        %1797 = vmatmul.f32.gmra.mxu0 %v1620
        %v1798 = vpop.f32.mrf.mxu0
        %v1799 = vadd.f32 0.0, %v1798
        %1800 = vmatmul.f32.gmra.mxu0 %v1621
        %v1801 = vpop.f32.mrf.mxu0
        %v1802 = vadd.f32 0.0, %v1801
        %1803 = vmatmul.f32.gmra.mxu0 %v1622
        %v1804 = vpop.f32.mrf.mxu0
        %v1805 = vadd.f32 0.0, %v1804
        %1806 = vmatmul.f32.gmra.mxu0 %v1623
        %v1807 = vpop.f32.mrf.mxu0
        %v1808 = vadd.f32 0.0, %v1807
        %1809 = vmatmul.f32.gmra.mxu0 %v1624
        %v1810 = vpop.f32.mrf.mxu0
        %v1811 = vadd.f32 0.0, %v1810
        %1812 = vmatmul.f32.gmra.mxu0 %v1625
        %v1813 = vpop.f32.mrf.mxu0
        %v1814 = vadd.f32 0.0, %v1813
        %1815 = vmatmul.f32.gmra.mxu0 %v1626
        %v1816 = vpop.f32.mrf.mxu0
        %v1817 = vadd.f32 0.0, %v1816
        %1818 = vmatmul.f32.gmra.mxu0 %v1627
        %v1819 = vpop.f32.mrf.mxu0
        %v1820 = vadd.f32 0.0, %v1819
        %1821 = vdwg.mxu0
        %1822 = vmatpush.msra.mxu0 %v1690
        %1823 = vmatpush.msra.mxu0 %v1686
        %1824 = vmatpush.msra.mxu0 %v1682
        %1825 = vmatpush.msra.mxu0 %v1678
        %1826 = vmatpush.msra.mxu0 %v1674
        %1827 = vmatpush.msra.mxu0 %v1670
        %1828 = vmatpush.msra.mxu0 %v1666
        %1829 = vmatpush.msra.mxu0 %v1662
        %1830 = vmatpush.msra.mxu0 %v1658
        %1831 = vmatpush.msra.mxu0 %v1654
        %1832 = vmatpush.msra.mxu0 %v1650
        %1833 = vmatpush.msra.mxu0 %v1646
        %1834 = vmatpush.msra.mxu0 %v1642
        %1835 = vmatpush.msra.mxu0 %v1638
        %1836 = vmatpush.msra.mxu0 %v1634
        %1837 = vmatpush.msra.mxu0 %v1630
        %1838 = vmatmul.f32.gmra.mxu0 %v1612
        %v1839 = vpop.f32.mrf.mxu0
        %v1840 = vadd.f32 0.0, %v1839
        %1841 = vmatmul.f32.gmra.mxu0 %v1613
        %v1842 = vpop.f32.mrf.mxu0
        %v1843 = vadd.f32 0.0, %v1842
        %1844 = vmatmul.f32.gmra.mxu0 %v1614
        %v1845 = vpop.f32.mrf.mxu0
        %v1846 = vadd.f32 0.0, %v1845
        %1847 = vmatmul.f32.gmra.mxu0 %v1615
        %v1848 = vpop.f32.mrf.mxu0
        %v1849 = vadd.f32 0.0, %v1848
        %1850 = vmatmul.f32.gmra.mxu0 %v1616
        %v1851 = vpop.f32.mrf.mxu0
        %v1852 = vadd.f32 0.0, %v1851
        %1853 = vmatmul.f32.gmra.mxu0 %v1617
        %v1854 = vpop.f32.mrf.mxu0
        %v1855 = vadd.f32 0.0, %v1854
        %1856 = vmatmul.f32.gmra.mxu0 %v1618
        %v1857 = vpop.f32.mrf.mxu0
        %v1858 = vadd.f32 0.0, %v1857
        %1859 = vmatmul.f32.gmra.mxu0 %v1619
        %v1860 = vpop.f32.mrf.mxu0
        %v1861 = vadd.f32 0.0, %v1860
        %1862 = vmatmul.f32.gmra.mxu0 %v1620
        %v1863 = vpop.f32.mrf.mxu0
        %v1864 = vadd.f32 0.0, %v1863
        %1865 = vmatmul.f32.gmra.mxu0 %v1621
        %v1866 = vpop.f32.mrf.mxu0
        %v1867 = vadd.f32 0.0, %v1866
        %1868 = vmatmul.f32.gmra.mxu0 %v1622
        %v1869 = vpop.f32.mrf.mxu0
        %v1870 = vadd.f32 0.0, %v1869
        %1871 = vmatmul.f32.gmra.mxu0 %v1623
        %v1872 = vpop.f32.mrf.mxu0
        %v1873 = vadd.f32 0.0, %v1872
        %1874 = vmatmul.f32.gmra.mxu0 %v1624
        %v1875 = vpop.f32.mrf.mxu0
        %v1876 = vadd.f32 0.0, %v1875
        %1877 = vmatmul.f32.gmra.mxu0 %v1625
        %v1878 = vpop.f32.mrf.mxu0
        %v1879 = vadd.f32 0.0, %v1878
        %1880 = vmatmul.f32.gmra.mxu0 %v1626
        %v1881 = vpop.f32.mrf.mxu0
        %v1882 = vadd.f32 0.0, %v1881
        %1883 = vmatmul.f32.gmra.mxu0 %v1627
        %v1884 = vpop.f32.mrf.mxu0
        %v1885 = vadd.f32 0.0, %v1884
        %1886 = vdwg.mxu0
        %1887 = vmatpush.msra.mxu0 %v1691
        %1888 = vmatpush.msra.mxu0 %v1687
        %1889 = vmatpush.msra.mxu0 %v1683
        %1890 = vmatpush.msra.mxu0 %v1679
        %1891 = vmatpush.msra.mxu0 %v1675
        %1892 = vmatpush.msra.mxu0 %v1671
        %1893 = vmatpush.msra.mxu0 %v1667
        %1894 = vmatpush.msra.mxu0 %v1663
        %1895 = vmatpush.msra.mxu0 %v1659
        %1896 = vmatpush.msra.mxu0 %v1655
        %1897 = vmatpush.msra.mxu0 %v1651
        %1898 = vmatpush.msra.mxu0 %v1647
        %1899 = vmatpush.msra.mxu0 %v1643
        %1900 = vmatpush.msra.mxu0 %v1639
        %1901 = vmatpush.msra.mxu0 %v1635
        %1902 = vmatpush.msra.mxu0 %v1631
        %1903 = vmatmul.f32.gmra.mxu0 %v1612
        %v1904 = vpop.f32.mrf.mxu0
        %v1905 = vadd.f32 0.0, %v1904
        %1906 = vmatmul.f32.gmra.mxu0 %v1613
        %v1907 = vpop.f32.mrf.mxu0
        %v1908 = vadd.f32 0.0, %v1907
        %1909 = vmatmul.f32.gmra.mxu0 %v1614
        %v1910 = vpop.f32.mrf.mxu0
        %v1911 = vadd.f32 0.0, %v1910
        %1912 = vmatmul.f32.gmra.mxu0 %v1615
        %v1913 = vpop.f32.mrf.mxu0
        %v1914 = vadd.f32 0.0, %v1913
        %1915 = vmatmul.f32.gmra.mxu0 %v1616
        %v1916 = vpop.f32.mrf.mxu0
        %v1917 = vadd.f32 0.0, %v1916
        %1918 = vmatmul.f32.gmra.mxu0 %v1617
        %v1919 = vpop.f32.mrf.mxu0
        %v1920 = vadd.f32 0.0, %v1919
        %1921 = vmatmul.f32.gmra.mxu0 %v1618
        %v1922 = vpop.f32.mrf.mxu0
        %v1923 = vadd.f32 0.0, %v1922
        %1924 = vmatmul.f32.gmra.mxu0 %v1619
        %v1925 = vpop.f32.mrf.mxu0
        %v1926 = vadd.f32 0.0, %v1925
        %1927 = vmatmul.f32.gmra.mxu0 %v1620
        %v1928 = vpop.f32.mrf.mxu0
        %v1929 = vadd.f32 0.0, %v1928
        %1930 = vmatmul.f32.gmra.mxu0 %v1621
        %v1931 = vpop.f32.mrf.mxu0
        %v1932 = vadd.f32 0.0, %v1931
        %1933 = vmatmul.f32.gmra.mxu0 %v1622
        %v1934 = vpop.f32.mrf.mxu0
        %v1935 = vadd.f32 0.0, %v1934
        %1936 = vmatmul.f32.gmra.mxu0 %v1623
        %v1937 = vpop.f32.mrf.mxu0
        %v1938 = vadd.f32 0.0, %v1937
        %1939 = vmatmul.f32.gmra.mxu0 %v1624
        %v1940 = vpop.f32.mrf.mxu0
        %v1941 = vadd.f32 0.0, %v1940
        %1942 = vmatmul.f32.gmra.mxu0 %v1625
        %v1943 = vpop.f32.mrf.mxu0
        %v1944 = vadd.f32 0.0, %v1943
        %1945 = vmatmul.f32.gmra.mxu0 %v1626
        %v1946 = vpop.f32.mrf.mxu0
        %v1947 = vadd.f32 0.0, %v1946
        %1948 = vmatmul.f32.gmra.mxu0 %v1627
        %v1949 = vpop.f32.mrf.mxu0
        %v1950 = vadd.f32 0.0, %v1949
        %1951 = vdwg.mxu0
        %1952 = vst [vmem:[%s221] sm:$0xff] %v1710
        %1953 = vst [vmem:[%s221 + $0x8] sm:$0xff] %v1775
        %1954 = vst [vmem:[%s221 + $0x10] sm:$0xff] %v1840
        %1955 = vst [vmem:[%s221 + $0x18] sm:$0xff] %v1905
        %1956 = vst [vmem:[%s221 + $0x20] sm:$0xff] %v1713
        %1957 = vst [vmem:[%s221 + $0x28] sm:$0xff] %v1778
        %1958 = vst [vmem:[%s221 + $0x30] sm:$0xff] %v1843
        %1959 = vst [vmem:[%s221 + $0x38] sm:$0xff] %v1908
        %1960 = vst [vmem:[%s221 + $0x40] sm:$0xff] %v1716
        %1961 = vst [vmem:[%s221 + $0x48] sm:$0xff] %v1781
        %1962 = vst [vmem:[%s221 + $0x50] sm:$0xff] %v1846
        %1963 = vst [vmem:[%s221 + $0x58] sm:$0xff] %v1911
        %1964 = vst [vmem:[%s221 + $0x60] sm:$0xff] %v1719
        %1965 = vst [vmem:[%s221 + $0x68] sm:$0xff] %v1784
        %1966 = vst [vmem:[%s221 + $0x70] sm:$0xff] %v1849
        %1967 = vst [vmem:[%s221 + $0x78] sm:$0xff] %v1914
        %1968 = vst [vmem:[%s221 + $0x80] sm:$0xff] %v1722
        %1969 = vst [vmem:[%s221 + $0x88] sm:$0xff] %v1787
        %1970 = vst [vmem:[%s221 + $0x90] sm:$0xff] %v1852
        %1971 = vst [vmem:[%s221 + $0x98] sm:$0xff] %v1917
        %1972 = vst [vmem:[%s221 + $0xa0] sm:$0xff] %v1725
        %1973 = vst [vmem:[%s221 + $0xa8] sm:$0xff] %v1790
        %1974 = vst [vmem:[%s221 + $0xb0] sm:$0xff] %v1855
        %1975 = vst [vmem:[%s221 + $0xb8] sm:$0xff] %v1920
        %1976 = vst [vmem:[%s221 + $0xc0] sm:$0xff] %v1728
        %1977 = vst [vmem:[%s221 + $0xc8] sm:$0xff] %v1793
        %1978 = vst [vmem:[%s221 + $0xd0] sm:$0xff] %v1858
        %1979 = vst [vmem:[%s221 + $0xd8] sm:$0xff] %v1923
        %1980 = vst [vmem:[%s221 + $0xe0] sm:$0xff] %v1731
        %1981 = vst [vmem:[%s221 + $0xe8] sm:$0xff] %v1796
        %1982 = vst [vmem:[%s221 + $0xf0] sm:$0xff] %v1861
        %1983 = vst [vmem:[%s221 + $0xf8] sm:$0xff] %v1926
        %1984 = vst [vmem:[%s221 + $0x100] sm:$0xff] %v1734
        %1985 = vst [vmem:[%s221 + $0x108] sm:$0xff] %v1799
        %1986 = vst [vmem:[%s221 + $0x110] sm:$0xff] %v1864
        %1987 = vst [vmem:[%s221 + $0x118] sm:$0xff] %v1929
        %1988 = vst [vmem:[%s221 + $0x120] sm:$0xff] %v1737
        %1989 = vst [vmem:[%s221 + $0x128] sm:$0xff] %v1802
        %1990 = vst [vmem:[%s221 + $0x130] sm:$0xff] %v1867
        %1991 = vst [vmem:[%s221 + $0x138] sm:$0xff] %v1932
        %1992 = vst [vmem:[%s221 + $0x140] sm:$0xff] %v1740
        %1993 = vst [vmem:[%s221 + $0x148] sm:$0xff] %v1805
        %1994 = vst [vmem:[%s221 + $0x150] sm:$0xff] %v1870
        %1995 = vst [vmem:[%s221 + $0x158] sm:$0xff] %v1935
        %1996 = vst [vmem:[%s221 + $0x160] sm:$0xff] %v1743
        %1997 = vst [vmem:[%s221 + $0x168] sm:$0xff] %v1808
        %1998 = vst [vmem:[%s221 + $0x170] sm:$0xff] %v1873
        %1999 = vst [vmem:[%s221 + $0x178] sm:$0xff] %v1938
        %2000 = vst [vmem:[%s221 + $0x180] sm:$0xff] %v1746
        %2001 = vst [vmem:[%s221 + $0x188] sm:$0xff] %v1811
        %2002 = vst [vmem:[%s221 + $0x190] sm:$0xff] %v1876
        %2003 = vst [vmem:[%s221 + $0x198] sm:$0xff] %v1941
        %2004 = vst [vmem:[%s221 + $0x1a0] sm:$0xff] %v1749
        %2005 = vst [vmem:[%s221 + $0x1a8] sm:$0xff] %v1814
        %2006 = vst [vmem:[%s221 + $0x1b0] sm:$0xff] %v1879
        %2007 = vst [vmem:[%s221 + $0x1b8] sm:$0xff] %v1944
        %2008 = vst [vmem:[%s221 + $0x1c0] sm:$0xff] %v1752
        %2009 = vst [vmem:[%s221 + $0x1c8] sm:$0xff] %v1817
        %2010 = vst [vmem:[%s221 + $0x1d0] sm:$0xff] %v1882
        %2011 = vst [vmem:[%s221 + $0x1d8] sm:$0xff] %v1947
        %2012 = vst [vmem:[%s221 + $0x1e0] sm:$0xff] %v1755
        %2013 = vst [vmem:[%s221 + $0x1e8] sm:$0xff] %v1820
        %2014 = vst [vmem:[%s221 + $0x1f0] sm:$0xff] %v1885
        %2015 = vst [vmem:[%s221 + $0x1f8] sm:$0xff] %v1950
        %s2016 = sand.u32 %s95, 1
        %s2017 = scalar_lea.sflag [#allocation5], %s2016
        %s2018 = sand.u32 %s95, 1
        %s2019 = smul.addr %s2018, 512
        %s2020 = scalar_lea.vmem [#allocation9], %s2019
        // Predicated region
        $region45: #{tpu_custom_call.1} parent=31 // pred_check
          %p2021 = pneg %p105
        $region46: #{tpu_custom_call.1} parent=31 // pred_check_branch
          %2023 = sbr.rel (%p2021) target = $region48
        $region47: #{tpu_custom_call.1} parent=31 // pred_region
          %s2024 = smul.u32 4, %s19
          %2026 = vsyncadd %s2017, 0
          %s2027 = smul.addr %s2024, 8
          %s2028 = scalar_lea.hbm %s3, %s2027
          %s2029 = sshll.u32 %s2020, 4
          %s2030 = int_to_ptr.vmem [resolvable:$true] %s2029
          %s2031 = sshll.u32 %s2028, 4
          %s2032 = int_to_ptr.hbm [resolvable:$true] %s2031
          %2037 = dma.vmem_to_hbm [thread:$0]  %s2030, 8192, %s2032, %s2017, 512, 1024, 32
        $region48: #{tpu_custom_call.1} parent=31 // pred_fallthru
          _
      $region32: #{tpu_custom_call.1} parent=5 // pred_fallthru
        _
      %p2038 = scmp.le.s32.totalorder 2, %s14
      // Predicated region
      $region49: #{tpu_custom_call.1} parent=5 // pred_check
        %p2039 = pneg %p2038
      $region50: #{tpu_custom_call.1} parent=5 // pred_check_branch
        %2041 = sbr.rel (%p2039) target = $region52
      $region51: #{tpu_custom_call.1} parent=5 // pred_region
        %s2042 = ssub.s32 %s14, 2
        // Predicated region
        $region53: #{tpu_custom_call.1} parent=51 // pred_check
          %p2043 = pneg %p111
        $region54: #{tpu_custom_call.1} parent=51 // pred_check_branch
          %2045 = sbr.rel (%p2043) target = $region56
        $region55: #{tpu_custom_call.1} parent=51 // pred_region
          %s2046 = sand.u32 %s96, 1
          %s2047 = scalar_lea.sflag [#allocation5], %s2046
          %s2048 = sand.u32 %s96, 1
          %s2049 = smul.addr %s2048, 512
          %s2050 = scalar_lea.vmem [#allocation9], %s2049
          %2052 = dma.done %s2047, 8192
        $region56: #{tpu_custom_call.1} parent=51 // pred_fallthru
          _
      $region52: #{tpu_custom_call.1} parent=5 // pred_fallthru
        _
    $region6: #{tpu_custom_call.1} parent=1 // loop_footer
      %s18 = sadd.s32 1, %s14
    $region7: #{tpu_custom_call.1} parent=1 // loop_footer_branch
      %13 = sbr.rel target = $region3
    $region8: #{tpu_custom_call.1} parent=1 // loop_exit
      _
    %2053 = vsyncpa [#allocation4], 1
    %s2054 = scalar_lea.sflag [#allocation4], 1
    %2055 = vsyncpa %s2054, 1
    %2056 = vsyncpa [#allocation7], 1
    %2057 = vsyncpa [#allocation5], 1
    %s2058 = scalar_lea.sflag [#allocation5], 1
    %2059 = vsyncpa %s2058, 1

</llo_original>
